<compile_context>
chip_gen: v7x
topology: tpu7x:2x2x1
jax: 0.10.0
libtpu: 0.0.40
codegen_flags: <defaults>
</compile_context>

<pallas_src>
import jax
import jax.numpy as jnp
from jax import lax
from jax.experimental import pallas as pl
from jax.experimental.pallas import tpu as pltpu


# ------------------------------------------------------------------ kernel ---
def _make_rel_attn_kernel(n_head, dk_p, dv_p):
    nk = n_head * dk_p          # lane width of the fused (padded) K projection

    def kernel(x_full_ref, x_qt_ref, wq_ref, bq_ref, wkv_ref, bkv_ref, rb_ref,
               wfft_ref, bff_ref, o_ref, k_scr, v_scr, attn_scr):
        qi = pl.program_id(1)

        # ---- K / V projection for the whole sequence, once per batch element ----
        @pl.when(qi == 0)
        def _():
            kv = lax.dot_general(x_full_ref[0], wkv_ref[...],      # (c,L) x (c,nk+nv)
                                 (((0,), (0,)), ((), ())),
                                 preferred_element_type=jnp.float32)
            kv = (kv + bkv_ref[...]).astype(jnp.bfloat16)          # (L, nk+nv)
            k_scr[...] = kv[:, :nk]                                # lane-aligned split
            v_scr[...] = kv[:, nk:]

        # ---- Q projection for this q-tile (bf16 operands, f32 accumulation) ----
        q_all = lax.dot_general(x_qt_ref[0], wq_ref[...],          # (c,tq) x (c,nk)
                                (((0,), (0,)), ((), ())),
                                preferred_element_type=jnp.float32)
        q_all = (q_all + bq_ref[...]).astype(jnp.bfloat16)         # (tq, nk)

        # ---- per-head attention; big (tq, L) temporaries live one head at a time ---
        for h in range(n_head):                                    # n_head small: unroll
            q_h = q_all[:, h * dk_p:(h + 1) * dk_p]                # lane-aligned slices
            k_h = k_scr[:, h * dk_p:(h + 1) * dk_p]
            v_h = v_scr[:, h * dv_p:(h + 1) * dv_p]

            # similarity = q @ k^T + relative bias (no 1/sqrt(d_k), as in PyTorch)
            sim = lax.dot_general(q_h, k_h, (((1,), (1,)), ((), ())),
                                  preferred_element_type=jnp.float32)
            sim = sim + rb_ref[h]                                  # bf16 bias, f32 add

            # softmax: max / sum / reciprocal in f32, probabilities fed to MXU as bf16
            m = jnp.max(sim, axis=-1, keepdims=True)
            p = jnp.exp(sim - m)                                   # f32 (tq, L)
            denom = jnp.sum(p, axis=-1, keepdims=True)
            inv = pl.reciprocal(denom, approx=False)               # exact; (tq,1) only

            o_h = jnp.dot(p.astype(jnp.bfloat16), v_h,
                          preferred_element_type=jnp.float32)      # (tq, dv_p)
            # normalize the small output instead of p, store into the head scratch
            attn_scr[:, h * dv_p:(h + 1) * dv_p] = (o_h * inv).astype(jnp.bfloat16)

        # ---- fused ff over all heads, emitted lane-dense as (out_c, tq) ----
        out_t = lax.dot_general(wfft_ref[...], attn_scr[...],
                                (((1,), (1,)), ((), ())),
                                preferred_element_type=jnp.float32)
        o_ref[0] = out_t + bff_ref[...]                            # bff is (out_c, 1)

    return kernel


# ------------------------------------------------------------------ helpers --
def _round_up(x, m):
    return ((x + m - 1) // m) * m


def _pick_q_tile(len_x):
    # Lane dims of q-tiled blocks must be a multiple of 128 or equal the full len_x.
    if len_x > 128 and len_x % 128 == 0:
        return 128
    return len_x


def _vmem_limit_bytes():
    try:
        cap = int(pltpu.get_tpu_info().vmem_capacity_bytes)
    except Exception:
        cap = 64 * 1024 * 1024          # conservative (v7x-sized) fallback
    return int(cap * 3 // 4)            # ~96 MiB on v5e/v6e (128 MiB), ~48 MiB on v7x


def get_relative_indices(H, W):
    """JAX port of RelativeAttention._get_relative_indices (vectorized)."""
    gy, gx = jnp.meshgrid(jnp.arange(H), jnp.arange(W), indexing="ij")
    gy = gy.reshape(-1)
    gx = gx.reshape(-1)
    rel_y = gy[None, :] - gy[:, None] + H
    rel_x = gx[None, :] - gx[:, None] + W
    return (rel_y * W + rel_x).astype(jnp.int32)                   # (len_x, len_x)


def init_params(key, in_channels, n_head, d_k, d_v, out_channels, inp_h, inp_w):
    ks = jax.random.split(key, 9)
    s = 0.1
    return {
        # stored head-major: (n_head, in_channels, d_k/d_v)
        "wq": jax.random.normal(ks[0], (n_head, in_channels, d_k), jnp.float32) * s,
        "wk": jax.random.normal(ks[1], (n_head, in_channels, d_k), jnp.float32) * s,
        "wv": jax.random.normal(ks[2], (n_head, in_channels, d_v), jnp.float32) * s,
        "bq": jax.random.normal(ks[3], (n_head, 1, d_k), jnp.float32) * s,
        "bk": jax.random.normal(ks[4], (n_head, 1, d_k), jnp.float32) * s,
        "bv": jax.random.normal(ks[5], (n_head, 1, d_v), jnp.float32) * s,
        "wff": jax.random.normal(ks[6], (n_head, d_v, out_channels), jnp.float32) * s,
        "bff": jax.random.normal(ks[7], (1, out_channels), jnp.float32) * s,
        "relative_bias": jax.random.normal(
            ks[8], (n_head, ((inp_h << 1) - 1) * ((inp_w << 1) - 1)), jnp.float32),
    }


# ------------------------------------------------------------------ wrapper --
def relative_attention_forward(x_nchw, params, H, W, q_tile=None):
    b, c = x_nchw.shape[0], x_nchw.shape[1]
    len_x = H * W
    n_head, _, d_k = params["wq"].shape
    d_v = params["wv"].shape[2]
    out_channels = params["wff"].shape[2]

    # pad per-head dims to 128 lanes so every in-kernel head slice is lane-aligned
    dk_p = _round_up(d_k, 128)
    dv_p = _round_up(d_v, 128)
    nk = n_head * dk_p
    nv = n_head * dv_p

    tq = q_tile if q_tile is not None else _pick_q_tile(len_x)
    assert len_x % tq == 0, "q tile must divide H*W"
    n_qt = len_x // tq

    # x stays channel-major (b, c, len_x); the transpose is folded into the kernel dots
    x = x_nchw.reshape(b, c, len_x).astype(jnp.bfloat16)

    def fuse(w, bias, d, d_pad):
        w = jnp.pad(w, ((0, 0), (0, 0), (0, d_pad - d)))           # (h, c, d_pad)
        bias = jnp.pad(bias, ((0, 0), (0, 0), (0, d_pad - d)))     # (h, 1, d_pad)
        wf = w.transpose(1, 0, 2).reshape(c, n_head * d_pad)
        bf = bias.transpose(1, 0, 2).reshape(1, n_head * d_pad)
        return wf, bf

    wq_f, bq_f = fuse(params["wq"], params["bq"], d_k, dk_p)
    wk_f, bk_f = fuse(params["wk"], params["bk"], d_k, dk_p)
    wv_f, bv_f = fuse(params["wv"], params["bv"], d_v, dv_p)
    wkv_f = jnp.concatenate([wk_f, wv_f], axis=1)                  # (c, nk+nv)
    bkv_f = jnp.concatenate([bk_f, bv_f], axis=1)                  # (1, nk+nv)

    # ff weight: zero-pad the per-head d_v rows, pre-transpose so the kernel emits a
    # lane-dense (out_channels, tq) block.
    wff = jnp.pad(params["wff"], ((0, 0), (0, dv_p - d_v), (0, 0)))  # (h, dv_p, out)
    wfft = wff.reshape(nv, out_channels).T                           # (out, nv)
    bff = params["bff"].reshape(out_channels, 1)                     # f32

    # parameter-only gather of the relative bias, done once in the wrapper
    rel_idx = get_relative_indices(H, W)
    rb = params["relative_bias"][:, rel_idx].astype(jnp.bfloat16)    # (h, len_x, len_x)

    # bf16 MXU operands; biases stay f32 (added into f32 accumulators)
    wq_f = wq_f.astype(jnp.bfloat16)
    wkv_f = wkv_f.astype(jnp.bfloat16)
    wfft = wfft.astype(jnp.bfloat16)

    out = pl.pallas_call(
        _make_rel_attn_kernel(n_head, dk_p, dv_p),
        out_shape=jax.ShapeDtypeStruct((b, out_channels, len_x), jnp.float32),
        grid_spec=pltpu.PrefetchScalarGridSpec(
            num_scalar_prefetch=0,
            grid=(b, n_qt),
            in_specs=[
                # full-sequence x (resident per batch; feeds K/V at qi == 0)
                pl.BlockSpec((1, c, len_x), lambda bi, qi: (bi, 0, 0)),
                # q-tile view of x (feeds the Q projection)
                pl.BlockSpec((1, c, tq), lambda bi, qi: (bi, 0, qi)),
                # constant-index parameters: stay VMEM-resident across the grid
                pl.BlockSpec((c, nk), lambda bi, qi: (0, 0)),
                pl.BlockSpec((1, nk), lambda bi, qi: (0, 0)),
                pl.BlockSpec((c, nk + nv), lambda bi, qi: (0, 0)),
                pl.BlockSpec((1, nk + nv), lambda bi, qi: (0, 0)),
                # relative bias streamed per q-tile: O(n_head*tq*len_x) resident,
                # never O(len_x^2) — the v7x VMEM wall from the review
                pl.BlockSpec((n_head, tq, len_x), lambda bi, qi: (0, qi, 0)),
                pl.BlockSpec((out_channels, nv), lambda bi, qi: (0, 0)),
                pl.BlockSpec((out_channels, 1), lambda bi, qi: (0, 0)),
            ],
            out_specs=pl.BlockSpec((1, out_channels, tq),
                                   lambda bi, qi: (bi, 0, qi)),
            scratch_shapes=[
                pltpu.VMEM((len_x, nk), jnp.bfloat16),   # K, full sequence (bf16)
                pltpu.VMEM((len_x, nv), jnp.bfloat16),   # V, full sequence (bf16)
                pltpu.VMEM((tq, nv), jnp.bfloat16),      # per-q-tile head outputs
            ],
        ),
        compiler_params=pltpu.CompilerParams(
            # batch shards across TensorCores; q axis stays sequential because the
            # K/V scratch is produced at qi == 0 and reused for qi > 0.
            dimension_semantics=("parallel", "arbitrary"),
            vmem_limit_bytes=_vmem_limit_bytes()),
    )(x, x, wq_f, bq_f, wkv_f, bkv_f, rb, wfft, bff)

    # Output is already channel-major (b, out_c, len_x): just reshape to NCHW.
    return out.reshape(b, out_channels, H, W)


# ---------------------------------------------------------------- reference --
def reference_forward(x_nchw, params, H, W):
    b, c = x_nchw.shape[0], x_nchw.shape[1]
    len_x = H * W
    x = x_nchw.reshape(b, c, len_x).transpose(0, 2, 1)
    q = jnp.einsum("blc,hcd->bhld", x, params["wq"]) + params["bq"][None]
    k = jnp.einsum("blc,hcd->bhld", x, params["wk"]) + params["bk"][None]
    v = jnp.einsum("blc,hcd->bhld", x, params["wv"]) + params["bv"][None]
    rel_idx = get_relative_indices(H, W)
    rb = params["relative_bias"][:, rel_idx]                       # (h, len_x, len_x)
    sim = jnp.einsum("bhqd,bhkd->bhqk", q, k) + rb[None]
    sim = jax.nn.softmax(sim, axis=-1)
    out = jnp.einsum("bhqk,bhkd->bhqd", sim, v)
    out = jnp.einsum("bhqd,hdo->bqo", out, params["wff"]) + params["bff"][None]
    out_channels = params["wff"].shape[2]
    return out.transpose(0, 2, 1).reshape(b, out_channels, H, W)


# -------------------------------------------------------------------- main ---
if __name__ == "__main__":
    # len_x = 256 -> two q tiles of 128, exercising the K/V-scratch-reuse path
    b, in_channels, H, W = 2, 8, 16, 16
    n_head, d_k, d_v, out_channels = 2, 8, 8, 16

    key = jax.random.PRNGKey(0)
    kx, kp = jax.random.split(key)
    x = jax.random.normal(kx, (b, in_channels, H, W), jnp.float32)
    params = init_params(kp, in_channels, n_head, d_k, d_v, out_channels, H, W)

    out = relative_attention_forward(x, params, H, W)
    out = jax.block_until_ready(out)

    ref = jax.block_until_ready(reference_forward(x, params, H, W))
    assert out.shape == (b, out_channels, H, W)
    # bf16 MXU operands / bf16 relative-bias storage => bf16-appropriate tolerance
    err = float(jnp.max(jnp.abs(out - ref)))
    assert jnp.allclose(out, ref, rtol=2e-2, atol=2e-2), f"max abs err {err}"

    print("KERNEL_OK")
</pallas_src>

<mosaic_0001>
module attributes {stable_mosaic.version = 11 : i64} {
  func.func @kernel(%arg0: i32, %arg1: i32, %arg2: memref<1x8x256xbf16, #tpu.memory_space<vmem>>, %arg3: memref<1x8x128xbf16, #tpu.memory_space<vmem>>, %arg4: memref<8x256xbf16, #tpu.memory_space<vmem>>, %arg5: memref<1x256xf32, #tpu.memory_space<vmem>>, %arg6: memref<8x512xbf16, #tpu.memory_space<vmem>>, %arg7: memref<1x512xf32, #tpu.memory_space<vmem>>, %arg8: memref<2x128x256xbf16, #tpu.memory_space<vmem>>, %arg9: memref<16x256xbf16, #tpu.memory_space<vmem>>, %arg10: memref<16x1xf32, #tpu.memory_space<vmem>>, %arg11: memref<1x16x128xf32, #tpu.memory_space<vmem>>, %arg12: memref<256x256xbf16, #tpu.memory_space<vmem>>, %arg13: memref<256x256xbf16, #tpu.memory_space<vmem>>, %arg14: memref<128x256xbf16, #tpu.memory_space<vmem>>) attributes {dimension_semantics = [#tpu.dimension_semantics<parallel>, #tpu.dimension_semantics<arbitrary>], iteration_bounds = array<i64: 2, 2>, scalar_prefetch = 0 : i64, scratch_operands = 3 : i64, tpu.core_type = #tpu.core_type<tc>, window_params = [{transform_indices = @transform_0, window_bounds = array<i64: 1, 8, 256>}, {transform_indices = @transform_1, window_bounds = array<i64: 1, 8, 128>}, {pipeline_mode = #tpu.pipeline_mode<synchronous>, transform_indices = @transform_2, window_bounds = array<i64: 8, 256>}, {pipeline_mode = #tpu.pipeline_mode<synchronous>, transform_indices = @transform_3, window_bounds = array<i64: 1, 256>}, {pipeline_mode = #tpu.pipeline_mode<synchronous>, transform_indices = @transform_4, window_bounds = array<i64: 8, 512>}, {pipeline_mode = #tpu.pipeline_mode<synchronous>, transform_indices = @transform_5, window_bounds = array<i64: 1, 512>}, {transform_indices = @transform_6, window_bounds = array<i64: 2, 128, 256>}, {pipeline_mode = #tpu.pipeline_mode<synchronous>, transform_indices = @transform_7, window_bounds = array<i64: 16, 256>}, {pipeline_mode = #tpu.pipeline_mode<synchronous>, transform_indices = @transform_8, window_bounds = array<i64: 16, 1>}, {transform_indices = @transform_9, window_bounds = array<i64: 1, 16, 128>}]} {
    %c0_i32 = arith.constant 0 : i32
    %0 = arith.cmpi eq, %arg1, %c0_i32 : i32
    %1 = arith.extui %0 : i1 to i32
    %c0_i32_0 = arith.constant 0 : i32
    %2 = arith.cmpi ne, %1, %c0_i32_0 : i32
    scf.if %2 {
      %c0_41 = arith.constant 0 : index
      %c0_42 = arith.constant 0 : index
      %c0_43 = arith.constant 0 : index
      %64 = vector.load %arg2[%c0_41, %c0_42, %c0_43] : memref<1x8x256xbf16, #tpu.memory_space<vmem>>, vector<1x8x256xbf16>
      %65 = vector.shape_cast %64 : vector<1x8x256xbf16> to vector<8x256xbf16>
      %c0_44 = arith.constant 0 : index
      %c0_45 = arith.constant 0 : index
      %66 = vector.load %arg6[%c0_44, %c0_45] : memref<8x512xbf16, #tpu.memory_space<vmem>>, vector<8x512xbf16>
      %cst_46 = arith.constant dense<0.000000e+00> : vector<256x512xf32>
      %67 = tpu.matmul %65, %66, %cst_46 {dimension_numbers = #tpu.dot_dimension_numbers<[0], [0], [1], [1], [0, 1, 1, 1], [], []>} : vector<8x256xbf16>, vector<8x512xbf16>, vector<256x512xf32> -> vector<256x512xf32>
      %c0_47 = arith.constant 0 : index
      %c0_48 = arith.constant 0 : index
      %68 = vector.load %arg7[%c0_47, %c0_48] : memref<1x512xf32, #tpu.memory_space<vmem>>, vector<1x512xf32>
      %69 = vector.broadcast %68 : vector<1x512xf32> to vector<256x512xf32>
      %70 = arith.addf %67, %69 : vector<256x512xf32>
      %71 = arith.truncf %70 : vector<256x512xf32> to vector<256x512xbf16>
      %72 = vector.extract_strided_slice %71 {offsets = [0, 0], sizes = [256, 256], strides = [1, 1]} : vector<256x512xbf16> to vector<256x256xbf16>
      %c0_49 = arith.constant 0 : index
      %c0_50 = arith.constant 0 : index
      %73 = vector.load %arg12[%c0_49, %c0_50] : memref<256x256xbf16, #tpu.memory_space<vmem>>, vector<256x256xbf16>
      tpu.vector_store %arg12[%c0_49, %c0_50], %72 {strides = array<i32>} : memref<256x256xbf16, #tpu.memory_space<vmem>>, vector<256x256xbf16>,
      %74 = vector.extract_strided_slice %71 {offsets = [0, 256], sizes = [256, 256], strides = [1, 1]} : vector<256x512xbf16> to vector<256x256xbf16>
      %c0_51 = arith.constant 0 : index
      %c0_52 = arith.constant 0 : index
      %75 = vector.load %arg13[%c0_51, %c0_52] : memref<256x256xbf16, #tpu.memory_space<vmem>>, vector<256x256xbf16>
      tpu.vector_store %arg13[%c0_51, %c0_52], %74 {strides = array<i32>} : memref<256x256xbf16, #tpu.memory_space<vmem>>, vector<256x256xbf16>,
    } else {
    }
    %c0 = arith.constant 0 : index
    %c0_1 = arith.constant 0 : index
    %c0_2 = arith.constant 0 : index
    %3 = vector.load %arg3[%c0, %c0_1, %c0_2] : memref<1x8x128xbf16, #tpu.memory_space<vmem>>, vector<1x8x128xbf16>
    %4 = vector.shape_cast %3 : vector<1x8x128xbf16> to vector<8x128xbf16>
    %c0_3 = arith.constant 0 : index
    %c0_4 = arith.constant 0 : index
    %5 = vector.load %arg4[%c0_3, %c0_4] : memref<8x256xbf16, #tpu.memory_space<vmem>>, vector<8x256xbf16>
    %cst = arith.constant dense<0.000000e+00> : vector<128x256xf32>
    %6 = tpu.matmul %4, %5, %cst {dimension_numbers = #tpu.dot_dimension_numbers<[0], [0], [1], [1], [0, 1, 1, 1], [], []>} : vector<8x128xbf16>, vector<8x256xbf16>, vector<128x256xf32> -> vector<128x256xf32>
    %c0_5 = arith.constant 0 : index
    %c0_6 = arith.constant 0 : index
    %7 = vector.load %arg5[%c0_5, %c0_6] : memref<1x256xf32, #tpu.memory_space<vmem>>, vector<1x256xf32>
    %8 = vector.broadcast %7 : vector<1x256xf32> to vector<128x256xf32>
    %9 = arith.addf %6, %8 : vector<128x256xf32>
    %10 = arith.truncf %9 : vector<128x256xf32> to vector<128x256xbf16>
    %11 = vector.extract_strided_slice %10 {offsets = [0, 0], sizes = [128, 128], strides = [1, 1]} : vector<128x256xbf16> to vector<128x128xbf16>
    %c0_7 = arith.constant 0 : index
    %c0_8 = arith.constant 0 : index
    %12 = vector.load %arg12[%c0_7, %c0_8] : memref<256x256xbf16, #tpu.memory_space<vmem>>, vector<256x128xbf16>
    %c0_9 = arith.constant 0 : index
    %c0_10 = arith.constant 0 : index
    %13 = vector.load %arg13[%c0_9, %c0_10] : memref<256x256xbf16, #tpu.memory_space<vmem>>, vector<256x128xbf16>
    %cst_11 = arith.constant dense<0.000000e+00> : vector<128x256xf32>
    %14 = tpu.matmul %11, %12, %cst_11 {dimension_numbers = #tpu.dot_dimension_numbers<[1], [1], [0], [0], [0, 0, 1, 0], [], []>} : vector<128x128xbf16>, vector<256x128xbf16>, vector<128x256xf32> -> vector<128x256xf32>
    %c0_12 = arith.constant 0 : index
    %c0_13 = arith.constant 0 : index
    %c0_14 = arith.constant 0 : index
    %15 = vector.load %arg8[%c0_12, %c0_13, %c0_14] : memref<2x128x256xbf16, #tpu.memory_space<vmem>>, vector<1x128x256xbf16>
    %16 = vector.shape_cast %15 : vector<1x128x256xbf16> to vector<128x256xbf16>
    %17 = arith.extf %16 : vector<128x256xbf16> to vector<128x256xf32>
    %18 = arith.addf %14, %17 : vector<128x256xf32>
    %cst_15 = arith.constant dense<0xFF800000> : vector<128xf32>
    %19 = vector.multi_reduction <maximumf>, %18, %cst_15 [1] : vector<128x256xf32> to vector<128xf32>
    %20 = vector.shape_cast %19 : vector<128xf32> to vector<128x1xf32>
    %21 = vector.broadcast %20 : vector<128x1xf32> to vector<128x256xf32>
    %22 = arith.subf %18, %21 : vector<128x256xf32>
    %23 = math.exp %22 : vector<128x256xf32>
    %cst_16 = arith.constant dense<0.000000e+00> : vector<128xf32>
    %24 = vector.multi_reduction <add>, %23, %cst_16 [1] : vector<128x256xf32> to vector<128xf32>
    %25 = vector.shape_cast %24 : vector<128xf32> to vector<128x1xf32>
    %26 = tpu.reciprocal %25 : vector<128x1xf32> -> vector<128x1xf32>
    %27 = arith.truncf %23 : vector<128x256xf32> to vector<128x256xbf16>
    %cst_17 = arith.constant dense<0.000000e+00> : vector<128x128xf32>
    %28 = tpu.matmul %27, %13, %cst_17 {dimension_numbers = #tpu.dot_dimension_numbers<[1], [0], [0], [1], [0, 0, 1, 1], [], []>} : vector<128x256xbf16>, vector<256x128xbf16>, vector<128x128xf32> -> vector<128x128xf32>
    %29 = vector.broadcast %26 : vector<128x1xf32> to vector<128x128xf32>
    %30 = arith.mulf %28, %29 : vector<128x128xf32>
    %31 = arith.truncf %30 : vector<128x128xf32> to vector<128x128xbf16>
    %c0_18 = arith.constant 0 : index
    %c0_19 = arith.constant 0 : index
    %32 = vector.load %arg14[%c0_18, %c0_19] : memref<128x256xbf16, #tpu.memory_space<vmem>>, vector<128x128xbf16>
    tpu.vector_store %arg14[%c0_18, %c0_19], %31 {strides = array<i32>} : memref<128x256xbf16, #tpu.memory_space<vmem>>, vector<128x128xbf16>,
    %33 = vector.extract_strided_slice %10 {offsets = [0, 128], sizes = [128, 128], strides = [1, 1]} : vector<128x256xbf16> to vector<128x128xbf16>
    %c0_20 = arith.constant 0 : index
    %c128 = arith.constant 128 : index
    %34 = vector.load %arg12[%c0_20, %c128] : memref<256x256xbf16, #tpu.memory_space<vmem>>, vector<256x128xbf16>
    %c0_21 = arith.constant 0 : index
    %c128_22 = arith.constant 128 : index
    %35 = vector.load %arg13[%c0_21, %c128_22] : memref<256x256xbf16, #tpu.memory_space<vmem>>, vector<256x128xbf16>
    %cst_23 = arith.constant dense<0.000000e+00> : vector<128x256xf32>
    %36 = tpu.matmul %33, %34, %cst_23 {dimension_numbers = #tpu.dot_dimension_numbers<[1], [1], [0], [0], [0, 0, 1, 0], [], []>} : vector<128x128xbf16>, vector<256x128xbf16>, vector<128x256xf32> -> vector<128x256xf32>
    %c1 = arith.constant 1 : index
    %c0_24 = arith.constant 0 : index
    %c0_25 = arith.constant 0 : index
    %37 = vector.load %arg8[%c1, %c0_24, %c0_25] : memref<2x128x256xbf16, #tpu.memory_space<vmem>>, vector<1x128x256xbf16>
    %38 = vector.shape_cast %37 : vector<1x128x256xbf16> to vector<128x256xbf16>
    %39 = arith.extf %38 : vector<128x256xbf16> to vector<128x256xf32>
    %40 = arith.addf %36, %39 : vector<128x256xf32>
    %cst_26 = arith.constant dense<0xFF800000> : vector<128xf32>
    %41 = vector.multi_reduction <maximumf>, %40, %cst_26 [1] : vector<128x256xf32> to vector<128xf32>
    %42 = vector.shape_cast %41 : vector<128xf32> to vector<128x1xf32>
    %43 = vector.broadcast %42 : vector<128x1xf32> to vector<128x256xf32>
    %44 = arith.subf %40, %43 : vector<128x256xf32>
    %45 = math.exp %44 : vector<128x256xf32>
    %cst_27 = arith.constant dense<0.000000e+00> : vector<128xf32>
    %46 = vector.multi_reduction <add>, %45, %cst_27 [1] : vector<128x256xf32> to vector<128xf32>
    %47 = vector.shape_cast %46 : vector<128xf32> to vector<128x1xf32>
    %48 = tpu.reciprocal %47 : vector<128x1xf32> -> vector<128x1xf32>
    %49 = arith.truncf %45 : vector<128x256xf32> to vector<128x256xbf16>
    %cst_28 = arith.constant dense<0.000000e+00> : vector<128x128xf32>
    %50 = tpu.matmul %49, %35, %cst_28 {dimension_numbers = #tpu.dot_dimension_numbers<[1], [0], [0], [1], [0, 0, 1, 1], [], []>} : vector<128x256xbf16>, vector<256x128xbf16>, vector<128x128xf32> -> vector<128x128xf32>
    %51 = vector.broadcast %48 : vector<128x1xf32> to vector<128x128xf32>
    %52 = arith.mulf %50, %51 : vector<128x128xf32>
    %53 = arith.truncf %52 : vector<128x128xf32> to vector<128x128xbf16>
    %c0_29 = arith.constant 0 : index
    %c128_30 = arith.constant 128 : index
    %54 = vector.load %arg14[%c0_29, %c128_30] : memref<128x256xbf16, #tpu.memory_space<vmem>>, vector<128x128xbf16>
    tpu.vector_store %arg14[%c0_29, %c128_30], %53 {strides = array<i32>} : memref<128x256xbf16, #tpu.memory_space<vmem>>, vector<128x128xbf16>,
    %c0_31 = arith.constant 0 : index
    %c0_32 = arith.constant 0 : index
    %55 = vector.load %arg9[%c0_31, %c0_32] : memref<16x256xbf16, #tpu.memory_space<vmem>>, vector<16x256xbf16>
    %c0_33 = arith.constant 0 : index
    %c0_34 = arith.constant 0 : index
    %56 = vector.load %arg14[%c0_33, %c0_34] : memref<128x256xbf16, #tpu.memory_space<vmem>>, vector<128x256xbf16>
    %cst_35 = arith.constant dense<0.000000e+00> : vector<16x128xf32>
    %57 = tpu.matmul %55, %56, %cst_35 {dimension_numbers = #tpu.dot_dimension_numbers<[1], [1], [0], [0], [0, 0, 1, 0], [], []>} : vector<16x256xbf16>, vector<128x256xbf16>, vector<16x128xf32> -> vector<16x128xf32>
    %c0_36 = arith.constant 0 : index
    %c0_37 = arith.constant 0 : index
    %58 = vector.load %arg10[%c0_36, %c0_37] : memref<16x1xf32, #tpu.memory_space<vmem>>, vector<16x1xf32>
    %59 = vector.broadcast %58 : vector<16x1xf32> to vector<16x128xf32>
    %60 = arith.addf %57, %59 : vector<16x128xf32>
    %c0_38 = arith.constant 0 : index
    %c0_39 = arith.constant 0 : index
    %c0_40 = arith.constant 0 : index
    %61 = vector.load %arg11[%c0_38, %c0_39, %c0_40] : memref<1x16x128xf32, #tpu.memory_space<vmem>>, vector<1x16x128xf32>
    %62 = vector.shape_cast %61 : vector<1x16x128xf32> to vector<16x128xf32>
    %63 = vector.shape_cast %60 : vector<16x128xf32> to vector<1x16x128xf32>
    tpu.vector_store %arg11[%c0_38, %c0_39, %c0_40], %63 {strides = array<i32>} : memref<1x16x128xf32, #tpu.memory_space<vmem>>, vector<1x16x128xf32>,
    return
  }
  func.func @transform_0(%arg0: i32, %arg1: i32) -> (i32, i32, i32) {
    %c0_i32 = arith.constant 0 : i32
    %c0_i32_0 = arith.constant 0 : i32
    %c0_i32_1 = arith.constant 0 : i32
    return %arg0, %c0_i32, %c0_i32_0 : i32, i32, i32
  }
  func.func @transform_1(%arg0: i32, %arg1: i32) -> (i32, i32, i32) {
    %c0_i32 = arith.constant 0 : i32
    %c0_i32_0 = arith.constant 0 : i32
    return %arg0, %c0_i32, %arg1 : i32, i32, i32
  }
  func.func @transform_2(%arg0: i32, %arg1: i32) -> (i32, i32) {
    %c0_i32 = arith.constant 0 : i32
    %c0_i32_0 = arith.constant 0 : i32
    %c0_i32_1 = arith.constant 0 : i32
    return %c0_i32, %c0_i32_0 : i32, i32
  }
  func.func @transform_3(%arg0: i32, %arg1: i32) -> (i32, i32) {
    %c0_i32 = arith.constant 0 : i32
    %c0_i32_0 = arith.constant 0 : i32
    %c0_i32_1 = arith.constant 0 : i32
    return %c0_i32, %c0_i32_0 : i32, i32
  }
  func.func @transform_4(%arg0: i32, %arg1: i32) -> (i32, i32) {
    %c0_i32 = arith.constant 0 : i32
    %c0_i32_0 = arith.constant 0 : i32
    %c0_i32_1 = arith.constant 0 : i32
    return %c0_i32, %c0_i32_0 : i32, i32
  }
  func.func @transform_5(%arg0: i32, %arg1: i32) -> (i32, i32) {
    %c0_i32 = arith.constant 0 : i32
    %c0_i32_0 = arith.constant 0 : i32
    %c0_i32_1 = arith.constant 0 : i32
    return %c0_i32, %c0_i32_0 : i32, i32
  }
  func.func @transform_6(%arg0: i32, %arg1: i32) -> (i32, i32, i32) {
    %c0_i32 = arith.constant 0 : i32
    %c0_i32_0 = arith.constant 0 : i32
    %c0_i32_1 = arith.constant 0 : i32
    return %c0_i32, %arg1, %c0_i32_0 : i32, i32, i32
  }
  func.func @transform_7(%arg0: i32, %arg1: i32) -> (i32, i32) {
    %c0_i32 = arith.constant 0 : i32
    %c0_i32_0 = arith.constant 0 : i32
    %c0_i32_1 = arith.constant 0 : i32
    return %c0_i32, %c0_i32_0 : i32, i32
  }
  func.func @transform_8(%arg0: i32, %arg1: i32) -> (i32, i32) {
    %c0_i32 = arith.constant 0 : i32
    %c0_i32_0 = arith.constant 0 : i32
    %c0_i32_1 = arith.constant 0 : i32
    return %c0_i32, %c0_i32_0 : i32, i32
  }
  func.func @transform_9(%arg0: i32, %arg1: i32) -> (i32, i32, i32) {
    %c0_i32 = arith.constant 0 : i32
    %c0_i32_0 = arith.constant 0 : i32
    return %arg0, %c0_i32, %arg1 : i32, i32, i32
  }
}

</mosaic_0001>

<llo_original>
// kernel: tpu_custom_call.1
$region0: #{tpu_custom_call.1}
  #allocation0 [shape = 'u32[]', space=smem, size = 0x4, offset = 0x4, fixed_abs, tag = 'smem constant byte address 0x4 - core index']
  #allocation1 [shape = 'u32[144,128]{1,0:T(1,128)}', space=vmem, size = 0x12000, scoped, tag = 'internal scratch']
  #allocation2 [shape = 'bf16[256,256]{1,0:T(16,128)(2,1)}', space=vmem, size = 0x20000, scoped, tag = 'scratch operand']
  #allocation3 [shape = 'bf16[256,256]{1,0:T(16,128)(2,1)}', space=vmem, size = 0x20000, scoped, tag = 'scratch operand']
  #allocation4 [shape = 'bf16[128,256]{1,0:T(16,128)(2,1)}', space=vmem, size = 0x10000, scoped, tag = 'scratch operand']
  #allocation16 [shape = 's32[]', space=sflag, size = 0x4, offset = 0, fixed_abs, tag = 'sflag constant byte address 0x0 - dummy sync flag']
  %s0 = inlined_call_operand.vmem [shape: bf16[2,8,256], index: 0, kind: input, shape index: {}]
  %s1 = inlined_call_operand.hbm [shape: bf16[2,8,256], index: 1, kind: input, shape index: {}]
  %s2 = inlined_call_operand.hbm [shape: bf16[8,256], index: 2, kind: input, shape index: {}]
  %s3 = inlined_call_operand.hbm [shape: f32[1,256], index: 3, kind: input, shape index: {}]
  %s4 = inlined_call_operand.vmem [shape: bf16[8,512], index: 4, kind: input, shape index: {}]
  %s5 = inlined_call_operand.hbm [shape: f32[1,512], index: 5, kind: input, shape index: {}]
  %s6 = inlined_call_operand.hbm [shape: bf16[2,256,256], index: 6, kind: input, shape index: {}]
  %s7 = inlined_call_operand.hbm [shape: bf16[16,256], index: 7, kind: input, shape index: {}]
  %s8 = inlined_call_operand.vmem [shape: f32[16,1], index: 8, kind: input, shape index: {}]
  %s9 = inlined_call_operand.hbm [shape: f32[2,16,256], index: 9, kind: output, shape index: {}]
  %s10 = sld [smem:[#allocation0]]
  $region97: #{tpu_custom_call.1} parent=0
    _
  %s12 = ssub.s32 1, %s10
  %s13 = scalar_select 0, %s12, %s10
  $region1: #{tpu_custom_call.1} parent=0
    #allocation5 [shape = 'u8[4096]{0}', space=vmem, size = 0x1000, scoped, tag = 'input window, operand 1']
    #allocation6 [shape = 's32[2]{0}', space=sflag, size = 0x8, scoped, tag = 'scoped memory for tpu_custom_call.1']
    #allocation7 [shape = 's32[2]{0}', space=sflag, size = 0x8, scoped, tag = 'scoped memory for tpu_custom_call.1']
    #allocation8 [shape = 'u8[4096]{0}', space=vmem, size = 0x1000, scoped, tag = 'input window, operand 2, single buffered']
    #allocation9 [shape = 's32[1]{0}', space=sflag, size = 0x4, scoped, tag = 'scoped memory for tpu_custom_call.1']
    #allocation10 [shape = 'u8[1024]{0}', space=vmem, size = 0x400, scoped, tag = 'input window, operand 3, single buffered']
    #allocation11 [shape = 'u8[2048]{0}', space=vmem, size = 0x800, scoped, tag = 'input window, operand 5, single buffered']
    #allocation12 [shape = 's32[1]{0}', space=sflag, size = 0x4, scoped, tag = 'scoped memory for tpu_custom_call.1']
    #allocation13 [shape = 'u8[262144]{0}', space=vmem, size = 0x40000, scoped, tag = 'input window, operand 6']
    #allocation14 [shape = 'u8[8192]{0}', space=vmem, size = 0x2000, scoped, tag = 'input window, operand 7, single buffered']
    #allocation15 [shape = 'u8[16384]{0}', space=vmem, size = 0x4000, scoped, tag = 'output window, operand 0']
    %14 = vsyncpa [#allocation6], 0
    %s15 = scalar_lea.sflag [#allocation6], 1
    %16 = vsyncpa %s15, 0
    %17 = vsyncpa [#allocation9], 0
    %18 = vsyncpa [#allocation12], 0
    %19 = vsyncpa [#allocation7], 0
    %s20 = scalar_lea.sflag [#allocation7], 1
    %21 = vsyncpa %s20, 0
    loop: start=0, step=1, limit=6
    $region2: #{tpu_custom_call.1} parent=1 // loop_pre_header
      _
    $region3: #{tpu_custom_call.1} parent=1 // loop_header
      %s23 = sphi 0, %s27
      %p24 = scmp.ge.s32.totalorder %s23, 6
      %s30 = sphi 0, %s42
      %s31 = sphi 0, %s38
      %s32 = sphi 0, %s30
      %s33 = sphi 0, %s31
      %s34 = sphi 0, %s32
      %s35 = sphi 0, %s33
      %s45 = sphi 0, %s47
      %s48 = sphi 0, %s45
      %s49 = sphi 0, %s48
      %s65 = sphi 0, %s49
      %s73 = sphi 0, %s75
      %s76 = sphi 0, %s73
      %s77 = sphi 0, %s76
      %s93 = sphi 0, %s77
      %s97 = sphi 0, %s97
      %s99 = sphi 0, %s97
      %s100 = sphi 0, %s99
      %s114 = sphi 0, %s100
      %s118 = sphi 0, %s118
      %s120 = sphi 0, %s118
      %s121 = sphi 0, %s120
      %s135 = sphi 0, %s121
      %s139 = sphi 0, %s139
      %s141 = sphi 0, %s139
      %s142 = sphi 0, %s141
      %s156 = sphi 0, %s142
      %s160 = sphi 0, %s160
      %s162 = sphi 0, %s160
      %s163 = sphi 0, %s162
      %s177 = sphi 0, %s163
      %s183 = sphi 0, %s185
      %s186 = sphi 0, %s183
      %s187 = sphi 0, %s186
      %s203 = sphi 0, %s187
      %s207 = sphi 0, %s207
      %s209 = sphi 0, %s207
      %s210 = sphi 0, %s209
      %s224 = sphi 0, %s210
      %s228 = sphi 0, %s228
      %s230 = sphi 0, %s228
      %s231 = sphi 0, %s230
      %s245 = sphi 0, %s231
      %s253 = sphi 0, %s255
      %s256 = sphi 0, %s253
      %s257 = sphi 0, %s256
      %s273 = sphi 0, %s257
    $region4: #{tpu_custom_call.1} parent=1 // loop_header_branch
      %26 = sbr.rel (%p24) target = $region8
    $region5: #{tpu_custom_call.1} parent=1 // loop_body
      %s28 = ssub.s32 %s23, 1
      %s29 = ssub.s32 %s23, 2
      %s36 = sadd.s32 1, %s31
      %p37 = scmp.ge.s32.totalorder %s36, 2
      %s38 = scalar_select %p37, 0, %s36
      %s39 = sadd.s32 1, %s30
      %s40 = scalar_select %p37, %s39, %s30
      %p41 = scmp.ge.s32.totalorder %s40, 2
      %s42 = scalar_select %p41, 0, %s40
      %s43 = ssub.s32 %s30, %s42
      %p44 = scmp.eq.s32.totalorder %s43, 0
      %s46 = sadd.s32 %s45, 1
      %s47 = scalar_select %p44, %s45, %s46
      %p50 = pneg %p44
      %p51 = scmp.eq.s32.totalorder %s23, 3
      %p52 = por %p50, %p51
      %p53 = scmp.ne.s32.totalorder %s45, %s48
      %p54 = scmp.eq.s32.totalorder %s23, 0
      %p55 = por %p53, %p54
      %p56 = scmp.ne.s32.totalorder %s45, %s48
      %p57 = scmp.eq.s32.totalorder %s28, 3
      %p58 = por %p56, %p57
      %p59 = scmp.ne.s32.totalorder %s48, %s49
      %p60 = scmp.eq.s32.totalorder %s28, 0
      %p61 = por %p59, %p60
      %p62 = scmp.ne.s32.totalorder %s48, %s49
      %p63 = scmp.eq.s32.totalorder %s29, 3
      %p64 = por %p62, %p63
      %p66 = scmp.ne.s32.totalorder %s49, %s65
      %p67 = scmp.eq.s32.totalorder %s29, 0
      %p68 = por %p66, %p67
      %s69 = ssub.s32 %s30, %s42
      %s70 = ssub.s32 %s31, %s38
      %s71 = sor.u32 %s69, %s70
      %p72 = scmp.eq.s32.totalorder %s71, 0
      %s74 = sadd.s32 %s73, 1
      %s75 = scalar_select %p72, %s73, %s74
      %p78 = pneg %p72
      %p79 = scmp.eq.s32.totalorder %s23, 3
      %p80 = por %p78, %p79
      %p81 = scmp.ne.s32.totalorder %s73, %s76
      %p82 = scmp.eq.s32.totalorder %s23, 0
      %p83 = por %p81, %p82
      %p84 = scmp.ne.s32.totalorder %s73, %s76
      %p85 = scmp.eq.s32.totalorder %s28, 3
      %p86 = por %p84, %p85
      %p87 = scmp.ne.s32.totalorder %s76, %s77
      %p88 = scmp.eq.s32.totalorder %s28, 0
      %p89 = por %p87, %p88
      %p90 = scmp.ne.s32.totalorder %s76, %s77
      %p91 = scmp.eq.s32.totalorder %s29, 3
      %p92 = por %p90, %p91
      %p94 = scmp.ne.s32.totalorder %s77, %s93
      %p95 = scmp.eq.s32.totalorder %s29, 0
      %p96 = por %p94, %p95
      %s98 = sadd.s32 %s97, 1
      %p101 = scmp.eq.s32.totalorder %s23, 3
      %p102 = scmp.ne.s32.totalorder %s97, %s99
      %p103 = scmp.eq.s32.totalorder %s23, 0
      %p104 = por %p102, %p103
      %p105 = scmp.ne.s32.totalorder %s97, %s99
      %p106 = scmp.eq.s32.totalorder %s28, 3
      %p107 = por %p105, %p106
      %p108 = scmp.ne.s32.totalorder %s99, %s100
      %p109 = scmp.eq.s32.totalorder %s28, 0
      %p110 = por %p108, %p109
      %p111 = scmp.ne.s32.totalorder %s99, %s100
      %p112 = scmp.eq.s32.totalorder %s29, 3
      %p113 = por %p111, %p112
      %p115 = scmp.ne.s32.totalorder %s100, %s114
      %p116 = scmp.eq.s32.totalorder %s29, 0
      %p117 = por %p115, %p116
      %s119 = sadd.s32 %s118, 1
      %p122 = scmp.eq.s32.totalorder %s23, 3
      %p123 = scmp.ne.s32.totalorder %s118, %s120
      %p124 = scmp.eq.s32.totalorder %s23, 0
      %p125 = por %p123, %p124
      %p126 = scmp.ne.s32.totalorder %s118, %s120
      %p127 = scmp.eq.s32.totalorder %s28, 3
      %p128 = por %p126, %p127
      %p129 = scmp.ne.s32.totalorder %s120, %s121
      %p130 = scmp.eq.s32.totalorder %s28, 0
      %p131 = por %p129, %p130
      %p132 = scmp.ne.s32.totalorder %s120, %s121
      %p133 = scmp.eq.s32.totalorder %s29, 3
      %p134 = por %p132, %p133
      %p136 = scmp.ne.s32.totalorder %s121, %s135
      %p137 = scmp.eq.s32.totalorder %s29, 0
      %p138 = por %p136, %p137
      %s140 = sadd.s32 %s139, 1
      %p143 = scmp.eq.s32.totalorder %s23, 3
      %p144 = scmp.ne.s32.totalorder %s139, %s141
      %p145 = scmp.eq.s32.totalorder %s23, 0
      %p146 = por %p144, %p145
      %p147 = scmp.ne.s32.totalorder %s139, %s141
      %p148 = scmp.eq.s32.totalorder %s28, 3
      %p149 = por %p147, %p148
      %p150 = scmp.ne.s32.totalorder %s141, %s142
      %p151 = scmp.eq.s32.totalorder %s28, 0
      %p152 = por %p150, %p151
      %p153 = scmp.ne.s32.totalorder %s141, %s142
      %p154 = scmp.eq.s32.totalorder %s29, 3
      %p155 = por %p153, %p154
      %p157 = scmp.ne.s32.totalorder %s142, %s156
      %p158 = scmp.eq.s32.totalorder %s29, 0
      %p159 = por %p157, %p158
      %s161 = sadd.s32 %s160, 1
      %p164 = scmp.eq.s32.totalorder %s23, 3
      %p165 = scmp.ne.s32.totalorder %s160, %s162
      %p166 = scmp.eq.s32.totalorder %s23, 0
      %p167 = por %p165, %p166
      %p168 = scmp.ne.s32.totalorder %s160, %s162
      %p169 = scmp.eq.s32.totalorder %s28, 3
      %p170 = por %p168, %p169
      %p171 = scmp.ne.s32.totalorder %s162, %s163
      %p172 = scmp.eq.s32.totalorder %s28, 0
      %p173 = por %p171, %p172
      %p174 = scmp.ne.s32.totalorder %s162, %s163
      %p175 = scmp.eq.s32.totalorder %s29, 3
      %p176 = por %p174, %p175
      %p178 = scmp.ne.s32.totalorder %s163, %s177
      %p179 = scmp.eq.s32.totalorder %s29, 0
      %p180 = por %p178, %p179
      %s181 = ssub.s32 %s31, %s38
      %p182 = scmp.eq.s32.totalorder %s181, 0
      %s184 = sadd.s32 %s183, 1
      %s185 = scalar_select %p182, %s183, %s184
      %p188 = pneg %p182
      %p189 = scmp.eq.s32.totalorder %s23, 3
      %p190 = por %p188, %p189
      %p191 = scmp.ne.s32.totalorder %s183, %s186
      %p192 = scmp.eq.s32.totalorder %s23, 0
      %p193 = por %p191, %p192
      %p194 = scmp.ne.s32.totalorder %s183, %s186
      %p195 = scmp.eq.s32.totalorder %s28, 3
      %p196 = por %p194, %p195
      %p197 = scmp.ne.s32.totalorder %s186, %s187
      %p198 = scmp.eq.s32.totalorder %s28, 0
      %p199 = por %p197, %p198
      %p200 = scmp.ne.s32.totalorder %s186, %s187
      %p201 = scmp.eq.s32.totalorder %s29, 3
      %p202 = por %p200, %p201
      %p204 = scmp.ne.s32.totalorder %s187, %s203
      %p205 = scmp.eq.s32.totalorder %s29, 0
      %p206 = por %p204, %p205
      %s208 = sadd.s32 %s207, 1
      %p211 = scmp.eq.s32.totalorder %s23, 3
      %p212 = scmp.ne.s32.totalorder %s207, %s209
      %p213 = scmp.eq.s32.totalorder %s23, 0
      %p214 = por %p212, %p213
      %p215 = scmp.ne.s32.totalorder %s207, %s209
      %p216 = scmp.eq.s32.totalorder %s28, 3
      %p217 = por %p215, %p216
      %p218 = scmp.ne.s32.totalorder %s209, %s210
      %p219 = scmp.eq.s32.totalorder %s28, 0
      %p220 = por %p218, %p219
      %p221 = scmp.ne.s32.totalorder %s209, %s210
      %p222 = scmp.eq.s32.totalorder %s29, 3
      %p223 = por %p221, %p222
      %p225 = scmp.ne.s32.totalorder %s210, %s224
      %p226 = scmp.eq.s32.totalorder %s29, 0
      %p227 = por %p225, %p226
      %s229 = sadd.s32 %s228, 1
      %p232 = scmp.eq.s32.totalorder %s23, 3
      %p233 = scmp.ne.s32.totalorder %s228, %s230
      %p234 = scmp.eq.s32.totalorder %s23, 0
      %p235 = por %p233, %p234
      %p236 = scmp.ne.s32.totalorder %s228, %s230
      %p237 = scmp.eq.s32.totalorder %s28, 3
      %p238 = por %p236, %p237
      %p239 = scmp.ne.s32.totalorder %s230, %s231
      %p240 = scmp.eq.s32.totalorder %s28, 0
      %p241 = por %p239, %p240
      %p242 = scmp.ne.s32.totalorder %s230, %s231
      %p243 = scmp.eq.s32.totalorder %s29, 3
      %p244 = por %p242, %p243
      %p246 = scmp.ne.s32.totalorder %s231, %s245
      %p247 = scmp.eq.s32.totalorder %s29, 0
      %p248 = por %p246, %p247
      %s249 = ssub.s32 %s30, %s42
      %s250 = ssub.s32 %s31, %s38
      %s251 = sor.u32 %s249, %s250
      %p252 = scmp.eq.s32.totalorder %s251, 0
      %s254 = sadd.s32 %s253, 1
      %s255 = scalar_select %p252, %s253, %s254
      %p258 = pneg %p252
      %p259 = scmp.eq.s32.totalorder %s23, 3
      %p260 = por %p258, %p259
      %p261 = scmp.ne.s32.totalorder %s253, %s256
      %p262 = scmp.eq.s32.totalorder %s23, 0
      %p263 = por %p261, %p262
      %p264 = scmp.ne.s32.totalorder %s253, %s256
      %p265 = scmp.eq.s32.totalorder %s28, 3
      %p266 = por %p264, %p265
      %p267 = scmp.ne.s32.totalorder %s256, %s257
      %p268 = scmp.eq.s32.totalorder %s28, 0
      %p269 = por %p267, %p268
      %p270 = scmp.ne.s32.totalorder %s256, %s257
      %p271 = scmp.eq.s32.totalorder %s29, 3
      %p272 = por %p270, %p271
      %p274 = scmp.ne.s32.totalorder %s257, %s273
      %p275 = scmp.eq.s32.totalorder %s29, 0
      %p276 = por %p274, %p275
      %p277 = scmp.le.s32.totalorder 1, %s23
      %p278 = scmp.lt.s32.totalorder %s23, 5
      %p279 = pnand %p277, %p278
      %p280 = pneg %p279
      // Predicated region
      $region9: #{tpu_custom_call.1} parent=5 // pred_check
        _
      $region10: #{tpu_custom_call.1} parent=5 // pred_check_branch
        %282 = sbr.rel (%p279) target = $region12
      $region11: #{tpu_custom_call.1} parent=5 // pred_region
        %s283 = ssub.s32 %s23, 1
        // Predicated region
        $region13: #{tpu_custom_call.1} parent=11 // pred_check
          %p284 = pneg %p110
        $region14: #{tpu_custom_call.1} parent=11 // pred_check_branch
          %286 = sbr.rel (%p284) target = $region16
        $region15: #{tpu_custom_call.1} parent=11 // pred_region
          %s288 = ssub.s32 128, 128
          %289 = vsyncadd [#allocation9], %s288
          %s291 = sshll.u32 [#allocation8], 4
          %s292 = int_to_ptr.vmem [resolvable:$true] %s291
          %294 = dma.hbm_to_vmem [thread:$0]  %s2, 128, %s292, [#allocation9]
        $region16: #{tpu_custom_call.1} parent=11 // pred_fallthru
          _
        // Predicated region
        $region17: #{tpu_custom_call.1} parent=11 // pred_check
          %p295 = pneg %p131
        $region18: #{tpu_custom_call.1} parent=11 // pred_check_branch
          %297 = sbr.rel (%p295) target = $region20
        $region19: #{tpu_custom_call.1} parent=11 // pred_region
          %s299 = ssub.s32 32, 32
          %300 = vsyncadd [#allocation9], %s299
          %s302 = sshll.u32 [#allocation10], 4
          %s303 = int_to_ptr.vmem [resolvable:$true] %s302
          %305 = dma.hbm_to_vmem [thread:$0]  %s3, 32, %s303, [#allocation9]
        $region20: #{tpu_custom_call.1} parent=11 // pred_fallthru
          _
        // Predicated region
        $region21: #{tpu_custom_call.1} parent=11 // pred_check
          %p306 = pneg %p152
        $region22: #{tpu_custom_call.1} parent=11 // pred_check_branch
          %308 = sbr.rel (%p306) target = $region24
        $region23: #{tpu_custom_call.1} parent=11 // pred_region
          _
        $region24: #{tpu_custom_call.1} parent=11 // pred_fallthru
          _
        // Predicated region
        $region25: #{tpu_custom_call.1} parent=11 // pred_check
          %p309 = pneg %p173
        $region26: #{tpu_custom_call.1} parent=11 // pred_check_branch
          %311 = sbr.rel (%p309) target = $region28
        $region27: #{tpu_custom_call.1} parent=11 // pred_region
          %s313 = ssub.s32 64, 64
          %314 = vsyncadd [#allocation12], %s313
          %s316 = sshll.u32 [#allocation11], 4
          %s317 = int_to_ptr.vmem [resolvable:$true] %s316
          %319 = dma.hbm_to_vmem [thread:$0]  %s5, 64, %s317, [#allocation12]
        $region28: #{tpu_custom_call.1} parent=11 // pred_fallthru
          _
        // Predicated region
        $region29: #{tpu_custom_call.1} parent=11 // pred_check
          %p320 = pneg %p220
        $region30: #{tpu_custom_call.1} parent=11 // pred_check_branch
          %322 = sbr.rel (%p320) target = $region32
        $region31: #{tpu_custom_call.1} parent=11 // pred_region
          %s324 = ssub.s32 256, 256
          %325 = vsyncadd [#allocation9], %s324
          %s326 = sshll.u32 [#allocation14], 4
          %s327 = int_to_ptr.vmem [resolvable:$true] %s326
          %332 = dma.hbm_to_vmem [thread:$0]  %s7, 256, %s327, [#allocation9], 128, 128, 8
        $region32: #{tpu_custom_call.1} parent=11 // pred_fallthru
          _
        // Predicated region
        $region33: #{tpu_custom_call.1} parent=11 // pred_check
          %p333 = pneg %p241
        $region34: #{tpu_custom_call.1} parent=11 // pred_check_branch
          %335 = sbr.rel (%p333) target = $region36
        $region35: #{tpu_custom_call.1} parent=11 // pred_region
          _
        $region36: #{tpu_custom_call.1} parent=11 // pred_fallthru
          _
      $region12: #{tpu_custom_call.1} parent=5 // pred_fallthru
        _
      %p336 = scmp.lt.s32.totalorder %s23, 4
      // Predicated region
      $region37: #{tpu_custom_call.1} parent=5 // pred_check
        %p337 = pneg %p336
      $region38: #{tpu_custom_call.1} parent=5 // pred_check_branch
        %339 = sbr.rel (%p337) target = $region40
      $region39: #{tpu_custom_call.1} parent=5 // pred_region
        // Predicated region
        $region41: #{tpu_custom_call.1} parent=39 // pred_check
          %p340 = pneg %p55
        $region42: #{tpu_custom_call.1} parent=39 // pred_check_branch
          %342 = sbr.rel (%p340) target = $region44
        $region43: #{tpu_custom_call.1} parent=39 // pred_region
          %p343 = scmp.lt.s32.totalorder %s30, 1
          %s344 = scalar_select %p343, %s30, 1
          %s345 = smul.addr %s344, 2
          %s346 = smul.addr %s345, 4
          %s347 = scalar_lea.vmem %s0, %s346
        $region44: #{tpu_custom_call.1} parent=39 // pred_fallthru
          _
        // Predicated region
        $region45: #{tpu_custom_call.1} parent=39 // pred_check
          %p348 = pneg %p83
        $region46: #{tpu_custom_call.1} parent=39 // pred_check_branch
          %350 = sbr.rel (%p348) target = $region48
        $region47: #{tpu_custom_call.1} parent=39 // pred_region
          %s351 = sand.u32 %s23, 1
          %s352 = scalar_lea.sflag [#allocation6], %s351
          %s353 = sand.u32 %s73, 1
          %s354 = smul.addr %s353, 4
          %s355 = scalar_lea.vmem [#allocation5], %s354
          %s357 = ssub.s32 64, 64
          %358 = vsyncadd %s352, %s357
          %s359 = smul.addr %s30, 2
          %s360 = sadd.s32 %s31, %s359
          %s361 = smul.addr %s360, 64
          %s362 = scalar_lea.hbm %s1, %s361
          %s364 = sshll.u32 %s355, 4
          %s365 = int_to_ptr.vmem [resolvable:$true] %s364
          %367 = dma.hbm_to_vmem [thread:$0]  %s362, 64, %s365, %s352
        $region48: #{tpu_custom_call.1} parent=39 // pred_fallthru
          _
        // Predicated region
        $region49: #{tpu_custom_call.1} parent=39 // pred_check
          %p368 = pneg %p193
        $region50: #{tpu_custom_call.1} parent=39 // pred_check_branch
          %370 = sbr.rel (%p368) target = $region52
        $region51: #{tpu_custom_call.1} parent=39 // pred_region
          #allocation17 [shape = 'u32[6]{0}', space=smem, size = 0x18, scoped, tag = 'DMA stride descriptor']
          %s371 = sand.u32 %s23, 1
          %s372 = scalar_lea.sflag [#allocation6], %s371
          %s373 = sand.u32 %s183, 1
          %s374 = smul.addr %s373, 256
          %s375 = scalar_lea.vmem [#allocation13], %s374
          %s376 = smul.u32 16, %s31
          %s378 = ssub.s32 4096, 4096
          %379 = vsyncadd %s372, %s378
          %s380 = smul.addr %s376, 2
          %s381 = smul.addr %s380, 64
          %s382 = scalar_lea.hbm %s6, %s381
          %s384 = sshll.u32 1, 14
          %s385 = sxor.u32 4294967295, %s384
          %s387 = sld [smem:[#allocation0]]
          %s388 = sadd.s32 2, %s387
          %s390 = sshll.u32 7, 26
          %s391 = sxor.u32 4294967295, %s390
          %s392 = sand.u32 0, %s391
          %s393 = sshll.u32 %s388, 26
          %s394 = sor.u32 %s392, %s393
          %s395 = sshll.u32 %s375, 4
          %s396 = int_to_ptr.vmem [resolvable:$true] %s395
          %402 = sst [smem:[#allocation17]] 4096
          %s403 = scalar_lea.smem [#allocation17], 1
          %404 = sst [smem:[%s403]] 2048
          %s405 = scalar_lea.smem [#allocation17], 2
          %406 = sst [smem:[%s405]] 16
          %s407 = scalar_lea.smem [#allocation17], 3
          %408 = sst [smem:[%s407]] 128
          %s409 = scalar_lea.smem [#allocation17], 4
          %410 = sst [smem:[%s409]] 128
          %s411 = scalar_lea.smem [#allocation17], 5
          %412 = sst [smem:[%s411]] 8
          %414 = dma.general %s382, 4096, %s396, %s372, [#allocation16], [#allocation17], %s394, 0
        $region52: #{tpu_custom_call.1} parent=39 // pred_fallthru
          _
      $region40: #{tpu_custom_call.1} parent=5 // pred_fallthru
        _
      %p415 = scmp.le.s32.totalorder 1, %s23
      %p416 = scmp.lt.s32.totalorder %s23, 5
      %p417 = pnand %p415, %p416
      %p418 = pneg %p417
      // Predicated region
      $region53: #{tpu_custom_call.1} parent=5 // pred_check
        _
      $region54: #{tpu_custom_call.1} parent=5 // pred_check_branch
        %420 = sbr.rel (%p417) target = $region56
      $region55: #{tpu_custom_call.1} parent=5 // pred_region
        %s421 = ssub.s32 %s23, 1
        %s422 = sand.u32 %s28, 1
        %s423 = scalar_lea.sflag [#allocation6], %s422
        %s424 = sand.u32 %s76, 1
        %s425 = smul.addr %s424, 4
        %s426 = scalar_lea.vmem [#allocation5], %s425
        // Predicated region
        $region57: #{tpu_custom_call.1} parent=55 // pred_check
          %p427 = pneg %p89
        $region58: #{tpu_custom_call.1} parent=55 // pred_check_branch
          %429 = sbr.rel (%p427) target = $region60
        $region59: #{tpu_custom_call.1} parent=55 // pred_region
          %430 = dma.done %s423, 64
        $region60: #{tpu_custom_call.1} parent=55 // pred_fallthru
          _
        // Predicated region
        $region61: #{tpu_custom_call.1} parent=55 // pred_check
          %p431 = pneg %p110
        $region62: #{tpu_custom_call.1} parent=55 // pred_check_branch
          %433 = sbr.rel (%p431) target = $region64
        $region63: #{tpu_custom_call.1} parent=55 // pred_region
          %434 = dma.done [#allocation9], 128
        $region64: #{tpu_custom_call.1} parent=55 // pred_fallthru
          _
        // Predicated region
        $region65: #{tpu_custom_call.1} parent=55 // pred_check
          %p435 = pneg %p131
        $region66: #{tpu_custom_call.1} parent=55 // pred_check_branch
          %437 = sbr.rel (%p435) target = $region68
        $region67: #{tpu_custom_call.1} parent=55 // pred_region
          %438 = dma.done [#allocation9], 32
        $region68: #{tpu_custom_call.1} parent=55 // pred_fallthru
          _
        // Predicated region
        $region69: #{tpu_custom_call.1} parent=55 // pred_check
          %p439 = pneg %p173
        $region70: #{tpu_custom_call.1} parent=55 // pred_check_branch
          %441 = sbr.rel (%p439) target = $region72
        $region71: #{tpu_custom_call.1} parent=55 // pred_region
          %442 = dma.done [#allocation12], 64
        $region72: #{tpu_custom_call.1} parent=55 // pred_fallthru
          _
        %s443 = sand.u32 %s28, 1
        %s444 = scalar_lea.sflag [#allocation6], %s443
        %s445 = sand.u32 %s186, 1
        %s446 = smul.addr %s445, 256
        %s447 = scalar_lea.vmem [#allocation13], %s446
        // Predicated region
        $region73: #{tpu_custom_call.1} parent=55 // pred_check
          %p448 = pneg %p199
        $region74: #{tpu_custom_call.1} parent=55 // pred_check_branch
          %450 = sbr.rel (%p448) target = $region76
        $region75: #{tpu_custom_call.1} parent=55 // pred_region
          %451 = dma.done %s444, 4096
        $region76: #{tpu_custom_call.1} parent=55 // pred_fallthru
          _
        // Predicated region
        $region77: #{tpu_custom_call.1} parent=55 // pred_check
          %p452 = pneg %p220
        $region78: #{tpu_custom_call.1} parent=55 // pred_check_branch
          %454 = sbr.rel (%p452) target = $region80
        $region79: #{tpu_custom_call.1} parent=55 // pred_region
          %455 = dma.done [#allocation9], 256
        $region80: #{tpu_custom_call.1} parent=55 // pred_fallthru
          _
        %p456 = scmp.lt.s32.totalorder %s32, 1
        %s457 = scalar_select %p456, %s32, 1
        %s458 = smul.addr %s457, 2
        %s459 = smul.addr %s458, 4
        %s460 = scalar_lea.vmem %s0, %s459
        %p461 = pneg %p61
        %p462 = pneg %p58
        %s463 = sand.u32 %s28, 1
        %s464 = scalar_lea.sflag [#allocation6], %s463
        %s465 = sand.u32 %s76, 1
        %s466 = smul.addr %s465, 4
        %s467 = scalar_lea.vmem [#allocation5], %s466
        %p468 = pneg %p89
        %p469 = pneg %p86
        %p470 = pneg %p110
        %p471 = pneg %p107
        %p472 = pneg %p131
        %p473 = pneg %p128
        %p474 = pneg %p152
        %p475 = pneg %p149
        %p476 = pneg %p173
        %p477 = pneg %p170
        %s478 = sand.u32 %s28, 1
        %s479 = scalar_lea.sflag [#allocation6], %s478
        %s480 = sand.u32 %s186, 1
        %s481 = smul.addr %s480, 256
        %s482 = scalar_lea.vmem [#allocation13], %s481
        %p483 = pneg %p199
        %p484 = pneg %p196
        %p485 = pneg %p220
        %p486 = pneg %p217
        %p487 = pneg %p241
        %p488 = pneg %p238
        %p489 = pneg %p269
        %p490 = pneg %p266
        %s491 = sand.u32 %s256, 1
        %s492 = scalar_lea.sflag [#allocation7], %s491
        %s493 = sand.u32 %s256, 1
        %s494 = smul.addr %s493, 16
        %s495 = scalar_lea.vmem [#allocation15], %s494
        %p496 = scmp.lt.s32.totalorder %s32, 1
        %s497 = scalar_select %p496, %s32, 1
        %s498 = smul.addr %s497, 2
        %s499 = smul.addr %s498, 4
        %s500 = scalar_lea.vmem %s0, %s499
        %s501 = smul.u32 16, %s33
        %p503 = scmp.eq.s32.totalorder %s33, 0
        // Predicated region
        $region81: #{tpu_custom_call.1} parent=55 // pred_check
          %p504 = pneg %p503
        $region82: #{tpu_custom_call.1} parent=55 // pred_check_branch
          %506 = sbr.rel (%p504) target = $region84
        $region83: #{tpu_custom_call.1} parent=55 // pred_region
          %v507 = vld [vmem:[%s500] sm:$0xff]
          %v508 = vld [vmem:[%s4] sm:$0xff]
          %v509 = vld [vmem:[%s4 + $0x8] sm:$0xff]
          %v510 = vld [vmem:[#allocation11] sm:$0xf]
          %v512 = vlaneseq
          %v513 = vshrl.u32 %v512, 7
          %v514 = vsub.s32 0, %v513
          %v515 = vrot.slane %v510, %v514
          %v516 = vlaneseq
          %v517 = vshrl.u32 %v516, 7
          %v518 = vsub.s32 1, %v517
          %v519 = vrot.slane %v510, %v518
          %v520 = vlaneseq
          %v521 = vshrl.u32 %v520, 7
          %v522 = vsub.s32 2, %v521
          %v523 = vrot.slane %v510, %v522
          %v524 = vlaneseq
          %v525 = vshrl.u32 %v524, 7
          %v526 = vsub.s32 3, %v525
          %v527 = vrot.slane %v510, %v526
          %v533 = vunpack.c.l.b16 %v507
          %v534 = vunpack.c.h.b16 %v507
          %v535 = vpack.c.b16 %v533, %v533
          %v536 = vpack.c.b16 %v534, %v534
          %539 = vxpose.xlu0.c.b16.start [1/8] %v535, 128
          %540 = vxpose.xlu0.c.b16.cont [2/8] 0, 128
          %541 = vxpose.xlu0.c.b16.cont [3/8] 0, 128
          %542 = vxpose.xlu0.c.b16.cont [4/8] 0, 128
          %543 = vxpose.xlu0.c.b16.cont [5/8] 0, 128
          %544 = vxpose.xlu0.c.b16.cont [6/8] 0, 128
          %545 = vxpose.xlu0.c.b16.cont [7/8] 0, 128
          %546 = vxpose.xlu0.c.b16.end [8/8] 0, 128
          %v547 = vpop.trf.xlu0
          %v548 = vpop.trf.xlu0
          %v549 = vpop.trf.xlu0
          %v550 = vpop.trf.xlu0
          %v551 = vpop.trf.xlu0
          %v552 = vpop.trf.xlu0
          %v553 = vpop.trf.xlu0
          %v554 = vpop.trf.xlu0
          %555 = vxpose.xlu0.c.b16.start [1/8] %v536, 128
          %556 = vxpose.xlu0.c.b16.cont [2/8] 0, 128
          %557 = vxpose.xlu0.c.b16.cont [3/8] 0, 128
          %558 = vxpose.xlu0.c.b16.cont [4/8] 0, 128
          %559 = vxpose.xlu0.c.b16.cont [5/8] 0, 128
          %560 = vxpose.xlu0.c.b16.cont [6/8] 0, 128
          %561 = vxpose.xlu0.c.b16.cont [7/8] 0, 128
          %562 = vxpose.xlu0.c.b16.end [8/8] 0, 128
          %v563 = vpop.trf.xlu0
          %v564 = vpop.trf.xlu0
          %v565 = vpop.trf.xlu0
          %v566 = vpop.trf.xlu0
          %v567 = vpop.trf.xlu0
          %v568 = vpop.trf.xlu0
          %v569 = vpop.trf.xlu0
          %v570 = vpop.trf.xlu0
          %v573 = vunpack.c.l.b16 %v508
          %v574 = vunpack.c.h.b16 %v508
          %v575 = vunpack.c.l.b16 %v509
          %v576 = vunpack.c.h.b16 %v509
          %v577 = vpack.c.b16 %v573, %v573
          %v578 = vpack.c.b16 %v574, %v574
          %v579 = vpack.c.b16 %v575, %v575
          %v580 = vpack.c.b16 %v576, %v576
          %vm581 = vcmask 64512
          %v583 = vsel %vm581, %v547, 0
          %v586 = vsel %vm581, %v548, 0
          %v589 = vsel %vm581, %v549, 0
          %v592 = vsel %vm581, %v550, 0
          %v595 = vsel %vm581, %v551, 0
          %v598 = vsel %vm581, %v552, 0
          %v601 = vsel %vm581, %v553, 0
          %v604 = vsel %vm581, %v554, 0
          %v607 = vsel %vm581, %v563, 0
          %v610 = vsel %vm581, %v564, 0
          %v613 = vsel %vm581, %v565, 0
          %v616 = vsel %vm581, %v566, 0
          %v619 = vsel %vm581, %v567, 0
          %v622 = vsel %vm581, %v568, 0
          %v625 = vsel %vm581, %v569, 0
          %v628 = vsel %vm581, %v570, 0
          %vm630 = vcmask 1043456
          %v632 = vsel %vm630, %v577, 0
          %v635 = vsel %vm630, %v578, 0
          %v638 = vsel %vm630, %v579, 0
          %v641 = vsel %vm630, %v580, 0
          %643 = vmatprep.subr.bf16.mxu0 %v635
          %644 = vmatpush1.bf16.msra.mxu0 %v632
          %645 = vmatprep.subr.bf16.mxu0 0
          %646 = vmatpush1.bf16.msra.mxu0 0
          %647 = vmatprep.subr.bf16.mxu0 0
          %648 = vmatpush1.bf16.msra.mxu0 0
          %649 = vmatprep.subr.bf16.mxu0 0
          %650 = vmatpush1.bf16.msra.mxu0 0
          %651 = vmatprep.subr.bf16.mxu0 0
          %652 = vmatpush1.bf16.msra.mxu0 0
          %653 = vmatprep.subr.bf16.mxu0 0
          %654 = vmatpush1.bf16.msra.mxu0 0
          %655 = vmatprep.subr.bf16.mxu0 0
          %656 = vmatpush1.bf16.msra.mxu0 0
          %657 = vmatprep.subr.bf16.mxu0 0
          %658 = vmatpush1.bf16.msra.mxu0 0
          %659 = vmatprep.subr.bf16.mxu0 0
          %660 = vmatpush1.bf16.msra.mxu0 0
          %661 = vmatprep.subr.bf16.mxu0 0
          %662 = vmatpush1.bf16.msra.mxu0 0
          %663 = vmatprep.subr.bf16.mxu0 0
          %664 = vmatpush1.bf16.msra.mxu0 0
          %665 = vmatprep.subr.bf16.mxu0 0
          %666 = vmatpush1.bf16.msra.mxu0 0
          %667 = vmatprep.subr.bf16.mxu0 0
          %668 = vmatpush1.bf16.msra.mxu0 0
          %669 = vmatprep.subr.bf16.mxu0 0
          %670 = vmatpush1.bf16.msra.mxu0 0
          %671 = vmatprep.subr.bf16.mxu0 0
          %672 = vmatpush1.bf16.msra.mxu0 0
          %673 = vmatprep.subr.bf16.mxu0 0
          %674 = vmatpush1.bf16.msra.mxu0 0
          %675 = vmatprep.mubr.bf16.mxu0 0
          %676 = vmatmul.mubr.bf16.gmra.mrb[0].mxu0 %v583
          %v677 = vpop.f32.mrb[0].mxu0
          %v678 = vadd.f32 %v515, %v677
          %v679 = vpop.f32.mrb[0].mxu0
          %v680 = vadd.f32 %v519, %v679
          %v681 = vpop.f32.mrb[0].mxu0
          %v682 = vadd.f32 %v515, %v681
          %v683 = vpop.f32.mrb[0].mxu0
          %v684 = vadd.f32 %v519, %v683
          %685 = vmatprep.mubr.bf16.mxu0 0
          %686 = vmatmul.mubr.bf16.gmra.mrb[0].mxu0 %v586
          %v687 = vpop.f32.mrb[0].mxu0
          %v688 = vadd.f32 %v515, %v687
          %v689 = vpop.f32.mrb[0].mxu0
          %v690 = vadd.f32 %v519, %v689
          %v691 = vpop.f32.mrb[0].mxu0
          %v692 = vadd.f32 %v515, %v691
          %v693 = vpop.f32.mrb[0].mxu0
          %v694 = vadd.f32 %v519, %v693
          %695 = vmatprep.mubr.bf16.mxu0 0
          %696 = vmatmul.mubr.bf16.gmra.mrb[0].mxu0 %v589
          %v697 = vpop.f32.mrb[0].mxu0
          %v698 = vadd.f32 %v515, %v697
          %v699 = vpop.f32.mrb[0].mxu0
          %v700 = vadd.f32 %v519, %v699
          %v701 = vpop.f32.mrb[0].mxu0
          %v702 = vadd.f32 %v515, %v701
          %v703 = vpop.f32.mrb[0].mxu0
          %v704 = vadd.f32 %v519, %v703
          %705 = vmatprep.mubr.bf16.mxu0 0
          %706 = vmatmul.mubr.bf16.gmra.mrb[0].mxu0 %v592
          %v707 = vpop.f32.mrb[0].mxu0
          %v708 = vadd.f32 %v515, %v707
          %v709 = vpop.f32.mrb[0].mxu0
          %v710 = vadd.f32 %v519, %v709
          %v711 = vpop.f32.mrb[0].mxu0
          %v712 = vadd.f32 %v515, %v711
          %v713 = vpop.f32.mrb[0].mxu0
          %v714 = vadd.f32 %v519, %v713
          %715 = vmatprep.mubr.bf16.mxu0 0
          %716 = vmatmul.mubr.bf16.gmra.mrb[0].mxu0 %v595
          %v717 = vpop.f32.mrb[0].mxu0
          %v718 = vadd.f32 %v515, %v717
          %v719 = vpop.f32.mrb[0].mxu0
          %v720 = vadd.f32 %v519, %v719
          %v721 = vpop.f32.mrb[0].mxu0
          %v722 = vadd.f32 %v515, %v721
          %v723 = vpop.f32.mrb[0].mxu0
          %v724 = vadd.f32 %v519, %v723
          %725 = vmatprep.mubr.bf16.mxu0 0
          %726 = vmatmul.mubr.bf16.gmra.mrb[0].mxu0 %v598
          %v727 = vpop.f32.mrb[0].mxu0
          %v728 = vadd.f32 %v515, %v727
          %v729 = vpop.f32.mrb[0].mxu0
          %v730 = vadd.f32 %v519, %v729
          %v731 = vpop.f32.mrb[0].mxu0
          %v732 = vadd.f32 %v515, %v731
          %v733 = vpop.f32.mrb[0].mxu0
          %v734 = vadd.f32 %v519, %v733
          %735 = vmatprep.mubr.bf16.mxu0 0
          %736 = vmatmul.mubr.bf16.gmra.mrb[0].mxu0 %v601
          %v737 = vpop.f32.mrb[0].mxu0
          %v738 = vadd.f32 %v515, %v737
          %v739 = vpop.f32.mrb[0].mxu0
          %v740 = vadd.f32 %v519, %v739
          %v741 = vpop.f32.mrb[0].mxu0
          %v742 = vadd.f32 %v515, %v741
          %v743 = vpop.f32.mrb[0].mxu0
          %v744 = vadd.f32 %v519, %v743
          %745 = vmatprep.mubr.bf16.mxu0 0
          %746 = vmatmul.mubr.bf16.gmra.mrb[0].mxu0 %v604
          %v747 = vpop.f32.mrb[0].mxu0
          %v748 = vadd.f32 %v515, %v747
          %v749 = vpop.f32.mrb[0].mxu0
          %v750 = vadd.f32 %v519, %v749
          %v751 = vpop.f32.mrb[0].mxu0
          %v752 = vadd.f32 %v515, %v751
          %v753 = vpop.f32.mrb[0].mxu0
          %v754 = vadd.f32 %v519, %v753
          %755 = vmatprep.mubr.bf16.mxu0 0
          %756 = vmatmul.mubr.bf16.gmra.mrb[0].mxu0 %v607
          %v757 = vpop.f32.mrb[0].mxu0
          %v758 = vadd.f32 %v515, %v757
          %v759 = vpop.f32.mrb[0].mxu0
          %v760 = vadd.f32 %v519, %v759
          %v761 = vpop.f32.mrb[0].mxu0
          %v762 = vadd.f32 %v515, %v761
          %v763 = vpop.f32.mrb[0].mxu0
          %v764 = vadd.f32 %v519, %v763
          %765 = vmatprep.mubr.bf16.mxu0 0
          %766 = vmatmul.mubr.bf16.gmra.mrb[0].mxu0 %v610
          %v767 = vpop.f32.mrb[0].mxu0
          %v768 = vadd.f32 %v515, %v767
          %v769 = vpop.f32.mrb[0].mxu0
          %v770 = vadd.f32 %v519, %v769
          %v771 = vpop.f32.mrb[0].mxu0
          %v772 = vadd.f32 %v515, %v771
          %v773 = vpop.f32.mrb[0].mxu0
          %v774 = vadd.f32 %v519, %v773
          %775 = vmatprep.mubr.bf16.mxu0 0
          %776 = vmatmul.mubr.bf16.gmra.mrb[0].mxu0 %v613
          %v777 = vpop.f32.mrb[0].mxu0
          %v778 = vadd.f32 %v515, %v777
          %v779 = vpop.f32.mrb[0].mxu0
          %v780 = vadd.f32 %v519, %v779
          %v781 = vpop.f32.mrb[0].mxu0
          %v782 = vadd.f32 %v515, %v781
          %v783 = vpop.f32.mrb[0].mxu0
          %v784 = vadd.f32 %v519, %v783
          %785 = vmatprep.mubr.bf16.mxu0 0
          %786 = vmatmul.mubr.bf16.gmra.mrb[0].mxu0 %v616
          %v787 = vpop.f32.mrb[0].mxu0
          %v788 = vadd.f32 %v515, %v787
          %v789 = vpop.f32.mrb[0].mxu0
          %v790 = vadd.f32 %v519, %v789
          %v791 = vpop.f32.mrb[0].mxu0
          %v792 = vadd.f32 %v515, %v791
          %v793 = vpop.f32.mrb[0].mxu0
          %v794 = vadd.f32 %v519, %v793
          %795 = vmatprep.mubr.bf16.mxu0 0
          %796 = vmatmul.mubr.bf16.gmra.mrb[0].mxu0 %v619
          %v797 = vpop.f32.mrb[0].mxu0
          %v798 = vadd.f32 %v515, %v797
          %v799 = vpop.f32.mrb[0].mxu0
          %v800 = vadd.f32 %v519, %v799
          %v801 = vpop.f32.mrb[0].mxu0
          %v802 = vadd.f32 %v515, %v801
          %v803 = vpop.f32.mrb[0].mxu0
          %v804 = vadd.f32 %v519, %v803
          %805 = vmatprep.mubr.bf16.mxu0 0
          %806 = vmatmul.mubr.bf16.gmra.mrb[0].mxu0 %v622
          %v807 = vpop.f32.mrb[0].mxu0
          %v808 = vadd.f32 %v515, %v807
          %v809 = vpop.f32.mrb[0].mxu0
          %v810 = vadd.f32 %v519, %v809
          %v811 = vpop.f32.mrb[0].mxu0
          %v812 = vadd.f32 %v515, %v811
          %v813 = vpop.f32.mrb[0].mxu0
          %v814 = vadd.f32 %v519, %v813
          %815 = vmatprep.mubr.bf16.mxu0 0
          %816 = vmatmul.mubr.bf16.gmra.mrb[0].mxu0 %v625
          %v817 = vpop.f32.mrb[0].mxu0
          %v818 = vadd.f32 %v515, %v817
          %v819 = vpop.f32.mrb[0].mxu0
          %v820 = vadd.f32 %v519, %v819
          %v821 = vpop.f32.mrb[0].mxu0
          %v822 = vadd.f32 %v515, %v821
          %v823 = vpop.f32.mrb[0].mxu0
          %v824 = vadd.f32 %v519, %v823
          %825 = vmatprep.mubr.bf16.mxu0 0
          %826 = vmatmul.mubr.bf16.gmra.mrb[0].mxu0 %v628
          %v827 = vpop.f32.mrb[0].mxu0
          %v828 = vadd.f32 %v515, %v827
          %v829 = vpop.f32.mrb[0].mxu0
          %v830 = vadd.f32 %v519, %v829
          %v831 = vpop.f32.mrb[0].mxu0
          %v832 = vadd.f32 %v515, %v831
          %v833 = vpop.f32.mrb[0].mxu0
          %v834 = vadd.f32 %v519, %v833
          %835 = vdwg.mxu0
          %836 = vmatprep.subr.bf16.mxu0 %v641
          %837 = vmatpush1.bf16.msra.mxu0 %v638
          %838 = vmatprep.subr.bf16.mxu0 0
          %839 = vmatpush1.bf16.msra.mxu0 0
          %840 = vmatprep.subr.bf16.mxu0 0
          %841 = vmatpush1.bf16.msra.mxu0 0
          %842 = vmatprep.subr.bf16.mxu0 0
          %843 = vmatpush1.bf16.msra.mxu0 0
          %844 = vmatprep.subr.bf16.mxu0 0
          %845 = vmatpush1.bf16.msra.mxu0 0
          %846 = vmatprep.subr.bf16.mxu0 0
          %847 = vmatpush1.bf16.msra.mxu0 0
          %848 = vmatprep.subr.bf16.mxu0 0
          %849 = vmatpush1.bf16.msra.mxu0 0
          %850 = vmatprep.subr.bf16.mxu0 0
          %851 = vmatpush1.bf16.msra.mxu0 0
          %852 = vmatprep.subr.bf16.mxu0 0
          %853 = vmatpush1.bf16.msra.mxu0 0
          %854 = vmatprep.subr.bf16.mxu0 0
          %855 = vmatpush1.bf16.msra.mxu0 0
          %856 = vmatprep.subr.bf16.mxu0 0
          %857 = vmatpush1.bf16.msra.mxu0 0
          %858 = vmatprep.subr.bf16.mxu0 0
          %859 = vmatpush1.bf16.msra.mxu0 0
          %860 = vmatprep.subr.bf16.mxu0 0
          %861 = vmatpush1.bf16.msra.mxu0 0
          %862 = vmatprep.subr.bf16.mxu0 0
          %863 = vmatpush1.bf16.msra.mxu0 0
          %864 = vmatprep.subr.bf16.mxu0 0
          %865 = vmatpush1.bf16.msra.mxu0 0
          %866 = vmatprep.subr.bf16.mxu0 0
          %867 = vmatpush1.bf16.msra.mxu0 0
          %868 = vmatprep.mubr.bf16.mxu0 0
          %869 = vmatmul.mubr.bf16.gmra.mrb[0].mxu0 %v583
          %v870 = vpop.f32.mrb[0].mxu0
          %v871 = vadd.f32 %v523, %v870
          %v872 = vpop.f32.mrb[0].mxu0
          %v873 = vadd.f32 %v527, %v872
          %v874 = vpop.f32.mrb[0].mxu0
          %v875 = vadd.f32 %v523, %v874
          %v876 = vpop.f32.mrb[0].mxu0
          %v877 = vadd.f32 %v527, %v876
          %878 = vmatprep.mubr.bf16.mxu0 0
          %879 = vmatmul.mubr.bf16.gmra.mrb[0].mxu0 %v586
          %v880 = vpop.f32.mrb[0].mxu0
          %v881 = vadd.f32 %v523, %v880
          %v882 = vpop.f32.mrb[0].mxu0
          %v883 = vadd.f32 %v527, %v882
          %v884 = vpop.f32.mrb[0].mxu0
          %v885 = vadd.f32 %v523, %v884
          %v886 = vpop.f32.mrb[0].mxu0
          %v887 = vadd.f32 %v527, %v886
          %888 = vmatprep.mubr.bf16.mxu0 0
          %889 = vmatmul.mubr.bf16.gmra.mrb[0].mxu0 %v589
          %v890 = vpop.f32.mrb[0].mxu0
          %v891 = vadd.f32 %v523, %v890
          %v892 = vpop.f32.mrb[0].mxu0
          %v893 = vadd.f32 %v527, %v892
          %v894 = vpop.f32.mrb[0].mxu0
          %v895 = vadd.f32 %v523, %v894
          %v896 = vpop.f32.mrb[0].mxu0
          %v897 = vadd.f32 %v527, %v896
          %898 = vmatprep.mubr.bf16.mxu0 0
          %899 = vmatmul.mubr.bf16.gmra.mrb[0].mxu0 %v592
          %v900 = vpop.f32.mrb[0].mxu0
          %v901 = vadd.f32 %v523, %v900
          %v902 = vpop.f32.mrb[0].mxu0
          %v903 = vadd.f32 %v527, %v902
          %v904 = vpop.f32.mrb[0].mxu0
          %v905 = vadd.f32 %v523, %v904
          %v906 = vpop.f32.mrb[0].mxu0
          %v907 = vadd.f32 %v527, %v906
          %908 = vmatprep.mubr.bf16.mxu0 0
          %909 = vmatmul.mubr.bf16.gmra.mrb[0].mxu0 %v595
          %v910 = vpop.f32.mrb[0].mxu0
          %v911 = vadd.f32 %v523, %v910
          %v912 = vpop.f32.mrb[0].mxu0
          %v913 = vadd.f32 %v527, %v912
          %v914 = vpop.f32.mrb[0].mxu0
          %v915 = vadd.f32 %v523, %v914
          %v916 = vpop.f32.mrb[0].mxu0
          %v917 = vadd.f32 %v527, %v916
          %918 = vmatprep.mubr.bf16.mxu0 0
          %919 = vmatmul.mubr.bf16.gmra.mrb[0].mxu0 %v598
          %v920 = vpop.f32.mrb[0].mxu0
          %v921 = vadd.f32 %v523, %v920
          %v922 = vpop.f32.mrb[0].mxu0
          %v923 = vadd.f32 %v527, %v922
          %v924 = vpop.f32.mrb[0].mxu0
          %v925 = vadd.f32 %v523, %v924
          %v926 = vpop.f32.mrb[0].mxu0
          %v927 = vadd.f32 %v527, %v926
          %928 = vmatprep.mubr.bf16.mxu0 0
          %929 = vmatmul.mubr.bf16.gmra.mrb[0].mxu0 %v601
          %v930 = vpop.f32.mrb[0].mxu0
          %v931 = vadd.f32 %v523, %v930
          %v932 = vpop.f32.mrb[0].mxu0
          %v933 = vadd.f32 %v527, %v932
          %v934 = vpop.f32.mrb[0].mxu0
          %v935 = vadd.f32 %v523, %v934
          %v936 = vpop.f32.mrb[0].mxu0
          %v937 = vadd.f32 %v527, %v936
          %938 = vmatprep.mubr.bf16.mxu0 0
          %939 = vmatmul.mubr.bf16.gmra.mrb[0].mxu0 %v604
          %v940 = vpop.f32.mrb[0].mxu0
          %v941 = vadd.f32 %v523, %v940
          %v942 = vpop.f32.mrb[0].mxu0
          %v943 = vadd.f32 %v527, %v942
          %v944 = vpop.f32.mrb[0].mxu0
          %v945 = vadd.f32 %v523, %v944
          %v946 = vpop.f32.mrb[0].mxu0
          %v947 = vadd.f32 %v527, %v946
          %948 = vmatprep.mubr.bf16.mxu0 0
          %949 = vmatmul.mubr.bf16.gmra.mrb[0].mxu0 %v607
          %v950 = vpop.f32.mrb[0].mxu0
          %v951 = vadd.f32 %v523, %v950
          %v952 = vpop.f32.mrb[0].mxu0
          %v953 = vadd.f32 %v527, %v952
          %v954 = vpop.f32.mrb[0].mxu0
          %v955 = vadd.f32 %v523, %v954
          %v956 = vpop.f32.mrb[0].mxu0
          %v957 = vadd.f32 %v527, %v956
          %958 = vmatprep.mubr.bf16.mxu0 0
          %959 = vmatmul.mubr.bf16.gmra.mrb[0].mxu0 %v610
          %v960 = vpop.f32.mrb[0].mxu0
          %v961 = vadd.f32 %v523, %v960
          %v962 = vpop.f32.mrb[0].mxu0
          %v963 = vadd.f32 %v527, %v962
          %v964 = vpop.f32.mrb[0].mxu0
          %v965 = vadd.f32 %v523, %v964
          %v966 = vpop.f32.mrb[0].mxu0
          %v967 = vadd.f32 %v527, %v966
          %968 = vmatprep.mubr.bf16.mxu0 0
          %969 = vmatmul.mubr.bf16.gmra.mrb[0].mxu0 %v613
          %v970 = vpop.f32.mrb[0].mxu0
          %v971 = vadd.f32 %v523, %v970
          %v972 = vpop.f32.mrb[0].mxu0
          %v973 = vadd.f32 %v527, %v972
          %v974 = vpop.f32.mrb[0].mxu0
          %v975 = vadd.f32 %v523, %v974
          %v976 = vpop.f32.mrb[0].mxu0
          %v977 = vadd.f32 %v527, %v976
          %978 = vmatprep.mubr.bf16.mxu0 0
          %979 = vmatmul.mubr.bf16.gmra.mrb[0].mxu0 %v616
          %v980 = vpop.f32.mrb[0].mxu0
          %v981 = vadd.f32 %v523, %v980
          %v982 = vpop.f32.mrb[0].mxu0
          %v983 = vadd.f32 %v527, %v982
          %v984 = vpop.f32.mrb[0].mxu0
          %v985 = vadd.f32 %v523, %v984
          %v986 = vpop.f32.mrb[0].mxu0
          %v987 = vadd.f32 %v527, %v986
          %988 = vmatprep.mubr.bf16.mxu0 0
          %989 = vmatmul.mubr.bf16.gmra.mrb[0].mxu0 %v619
          %v990 = vpop.f32.mrb[0].mxu0
          %v991 = vadd.f32 %v523, %v990
          %v992 = vpop.f32.mrb[0].mxu0
          %v993 = vadd.f32 %v527, %v992
          %v994 = vpop.f32.mrb[0].mxu0
          %v995 = vadd.f32 %v523, %v994
          %v996 = vpop.f32.mrb[0].mxu0
          %v997 = vadd.f32 %v527, %v996
          %998 = vmatprep.mubr.bf16.mxu0 0
          %999 = vmatmul.mubr.bf16.gmra.mrb[0].mxu0 %v622
          %v1000 = vpop.f32.mrb[0].mxu0
          %v1001 = vadd.f32 %v523, %v1000
          %v1002 = vpop.f32.mrb[0].mxu0
          %v1003 = vadd.f32 %v527, %v1002
          %v1004 = vpop.f32.mrb[0].mxu0
          %v1005 = vadd.f32 %v523, %v1004
          %v1006 = vpop.f32.mrb[0].mxu0
          %v1007 = vadd.f32 %v527, %v1006
          %1008 = vmatprep.mubr.bf16.mxu0 0
          %1009 = vmatmul.mubr.bf16.gmra.mrb[0].mxu0 %v625
          %v1010 = vpop.f32.mrb[0].mxu0
          %v1011 = vadd.f32 %v523, %v1010
          %v1012 = vpop.f32.mrb[0].mxu0
          %v1013 = vadd.f32 %v527, %v1012
          %v1014 = vpop.f32.mrb[0].mxu0
          %v1015 = vadd.f32 %v523, %v1014
          %v1016 = vpop.f32.mrb[0].mxu0
          %v1017 = vadd.f32 %v527, %v1016
          %1018 = vmatprep.mubr.bf16.mxu0 0
          %1019 = vmatmul.mubr.bf16.gmra.mrb[0].mxu0 %v628
          %v1020 = vpop.f32.mrb[0].mxu0
          %v1021 = vadd.f32 %v523, %v1020
          %v1022 = vpop.f32.mrb[0].mxu0
          %v1023 = vadd.f32 %v527, %v1022
          %v1024 = vpop.f32.mrb[0].mxu0
          %v1025 = vadd.f32 %v523, %v1024
          %v1026 = vpop.f32.mrb[0].mxu0
          %v1027 = vadd.f32 %v527, %v1026
          %1028 = vdwg.mxu0
          %v1029 = vpack.c.bf16 %v682, %v678
          %v1030 = vpack.c.bf16 %v684, %v680
          %v1031 = vpack.c.bf16 %v875, %v871
          %v1032 = vpack.c.bf16 %v877, %v873
          %v1033 = vpack.c.bf16 %v692, %v688
          %v1034 = vpack.c.bf16 %v694, %v690
          %v1035 = vpack.c.bf16 %v885, %v881
          %v1036 = vpack.c.bf16 %v887, %v883
          %v1037 = vpack.c.bf16 %v702, %v698
          %v1038 = vpack.c.bf16 %v704, %v700
          %v1039 = vpack.c.bf16 %v895, %v891
          %v1040 = vpack.c.bf16 %v897, %v893
          %v1041 = vpack.c.bf16 %v712, %v708
          %v1042 = vpack.c.bf16 %v714, %v710
          %v1043 = vpack.c.bf16 %v905, %v901
          %v1044 = vpack.c.bf16 %v907, %v903
          %v1045 = vpack.c.bf16 %v722, %v718
          %v1046 = vpack.c.bf16 %v724, %v720
          %v1047 = vpack.c.bf16 %v915, %v911
          %v1048 = vpack.c.bf16 %v917, %v913
          %v1049 = vpack.c.bf16 %v732, %v728
          %v1050 = vpack.c.bf16 %v734, %v730
          %v1051 = vpack.c.bf16 %v925, %v921
          %v1052 = vpack.c.bf16 %v927, %v923
          %v1053 = vpack.c.bf16 %v742, %v738
          %v1054 = vpack.c.bf16 %v744, %v740
          %v1055 = vpack.c.bf16 %v935, %v931
          %v1056 = vpack.c.bf16 %v937, %v933
          %v1057 = vpack.c.bf16 %v752, %v748
          %v1058 = vpack.c.bf16 %v754, %v750
          %v1059 = vpack.c.bf16 %v945, %v941
          %v1060 = vpack.c.bf16 %v947, %v943
          %v1061 = vpack.c.bf16 %v762, %v758
          %v1062 = vpack.c.bf16 %v764, %v760
          %v1063 = vpack.c.bf16 %v955, %v951
          %v1064 = vpack.c.bf16 %v957, %v953
          %v1065 = vpack.c.bf16 %v772, %v768
          %v1066 = vpack.c.bf16 %v774, %v770
          %v1067 = vpack.c.bf16 %v965, %v961
          %v1068 = vpack.c.bf16 %v967, %v963
          %v1069 = vpack.c.bf16 %v782, %v778
          %v1070 = vpack.c.bf16 %v784, %v780
          %v1071 = vpack.c.bf16 %v975, %v971
          %v1072 = vpack.c.bf16 %v977, %v973
          %v1073 = vpack.c.bf16 %v792, %v788
          %v1074 = vpack.c.bf16 %v794, %v790
          %v1075 = vpack.c.bf16 %v985, %v981
          %v1076 = vpack.c.bf16 %v987, %v983
          %v1077 = vpack.c.bf16 %v802, %v798
          %v1078 = vpack.c.bf16 %v804, %v800
          %v1079 = vpack.c.bf16 %v995, %v991
          %v1080 = vpack.c.bf16 %v997, %v993
          %v1081 = vpack.c.bf16 %v812, %v808
          %v1082 = vpack.c.bf16 %v814, %v810
          %v1083 = vpack.c.bf16 %v1005, %v1001
          %v1084 = vpack.c.bf16 %v1007, %v1003
          %v1085 = vpack.c.bf16 %v822, %v818
          %v1086 = vpack.c.bf16 %v824, %v820
          %v1087 = vpack.c.bf16 %v1015, %v1011
          %v1088 = vpack.c.bf16 %v1017, %v1013
          %v1089 = vpack.c.bf16 %v832, %v828
          %v1090 = vpack.c.bf16 %v834, %v830
          %v1091 = vpack.c.bf16 %v1025, %v1021
          %v1092 = vpack.c.bf16 %v1027, %v1023
          %1093 = vst [vmem:[#allocation2] sm:$0xff] %v1029
          %1094 = vst [vmem:[#allocation2 + $0x8] sm:$0xff] %v1030
          %1095 = vst [vmem:[#allocation2 + $0x10] sm:$0xff] %v1033
          %1096 = vst [vmem:[#allocation2 + $0x18] sm:$0xff] %v1034
          %1097 = vst [vmem:[#allocation2 + $0x20] sm:$0xff] %v1037
          %1098 = vst [vmem:[#allocation2 + $0x28] sm:$0xff] %v1038
          %1099 = vst [vmem:[#allocation2 + $0x30] sm:$0xff] %v1041
          %1100 = vst [vmem:[#allocation2 + $0x38] sm:$0xff] %v1042
          %1101 = vst [vmem:[#allocation2 + $0x40] sm:$0xff] %v1045
          %1102 = vst [vmem:[#allocation2 + $0x48] sm:$0xff] %v1046
          %1103 = vst [vmem:[#allocation2 + $0x50] sm:$0xff] %v1049
          %1104 = vst [vmem:[#allocation2 + $0x58] sm:$0xff] %v1050
          %1105 = vst [vmem:[#allocation2 + $0x60] sm:$0xff] %v1053
          %1106 = vst [vmem:[#allocation2 + $0x68] sm:$0xff] %v1054
          %1107 = vst [vmem:[#allocation2 + $0x70] sm:$0xff] %v1057
          %1108 = vst [vmem:[#allocation2 + $0x78] sm:$0xff] %v1058
          %1109 = vst [vmem:[#allocation2 + $0x80] sm:$0xff] %v1061
          %1110 = vst [vmem:[#allocation2 + $0x88] sm:$0xff] %v1062
          %1111 = vst [vmem:[#allocation2 + $0x90] sm:$0xff] %v1065
          %1112 = vst [vmem:[#allocation2 + $0x98] sm:$0xff] %v1066
          %1113 = vst [vmem:[#allocation2 + $0xa0] sm:$0xff] %v1069
          %1114 = vst [vmem:[#allocation2 + $0xa8] sm:$0xff] %v1070
          %1115 = vst [vmem:[#allocation2 + $0xb0] sm:$0xff] %v1073
          %1116 = vst [vmem:[#allocation2 + $0xb8] sm:$0xff] %v1074
          %1117 = vst [vmem:[#allocation2 + $0xc0] sm:$0xff] %v1077
          %1118 = vst [vmem:[#allocation2 + $0xc8] sm:$0xff] %v1078
          %1119 = vst [vmem:[#allocation2 + $0xd0] sm:$0xff] %v1081
          %1120 = vst [vmem:[#allocation2 + $0xd8] sm:$0xff] %v1082
          %1121 = vst [vmem:[#allocation2 + $0xe0] sm:$0xff] %v1085
          %1122 = vst [vmem:[#allocation2 + $0xe8] sm:$0xff] %v1086
          %1123 = vst [vmem:[#allocation2 + $0xf0] sm:$0xff] %v1089
          %1124 = vst [vmem:[#allocation2 + $0xf8] sm:$0xff] %v1090
          %1125 = vst [vmem:[#allocation3] sm:$0xff] %v1031
          %1126 = vst [vmem:[#allocation3 + $0x8] sm:$0xff] %v1032
          %1127 = vst [vmem:[#allocation3 + $0x10] sm:$0xff] %v1035
          %1128 = vst [vmem:[#allocation3 + $0x18] sm:$0xff] %v1036
          %1129 = vst [vmem:[#allocation3 + $0x20] sm:$0xff] %v1039
          %1130 = vst [vmem:[#allocation3 + $0x28] sm:$0xff] %v1040
          %1131 = vst [vmem:[#allocation3 + $0x30] sm:$0xff] %v1043
          %1132 = vst [vmem:[#allocation3 + $0x38] sm:$0xff] %v1044
          %1133 = vst [vmem:[#allocation3 + $0x40] sm:$0xff] %v1047
          %1134 = vst [vmem:[#allocation3 + $0x48] sm:$0xff] %v1048
          %1135 = vst [vmem:[#allocation3 + $0x50] sm:$0xff] %v1051
          %1136 = vst [vmem:[#allocation3 + $0x58] sm:$0xff] %v1052
          %1137 = vst [vmem:[#allocation3 + $0x60] sm:$0xff] %v1055
          %1138 = vst [vmem:[#allocation3 + $0x68] sm:$0xff] %v1056
          %1139 = vst [vmem:[#allocation3 + $0x70] sm:$0xff] %v1059
          %1140 = vst [vmem:[#allocation3 + $0x78] sm:$0xff] %v1060
          %1141 = vst [vmem:[#allocation3 + $0x80] sm:$0xff] %v1063
          %1142 = vst [vmem:[#allocation3 + $0x88] sm:$0xff] %v1064
          %1143 = vst [vmem:[#allocation3 + $0x90] sm:$0xff] %v1067
          %1144 = vst [vmem:[#allocation3 + $0x98] sm:$0xff] %v1068
          %1145 = vst [vmem:[#allocation3 + $0xa0] sm:$0xff] %v1071
          %1146 = vst [vmem:[#allocation3 + $0xa8] sm:$0xff] %v1072
          %1147 = vst [vmem:[#allocation3 + $0xb0] sm:$0xff] %v1075
          %1148 = vst [vmem:[#allocation3 + $0xb8] sm:$0xff] %v1076
          %1149 = vst [vmem:[#allocation3 + $0xc0] sm:$0xff] %v1079
          %1150 = vst [vmem:[#allocation3 + $0xc8] sm:$0xff] %v1080
          %1151 = vst [vmem:[#allocation3 + $0xd0] sm:$0xff] %v1083
          %1152 = vst [vmem:[#allocation3 + $0xd8] sm:$0xff] %v1084
          %1153 = vst [vmem:[#allocation3 + $0xe0] sm:$0xff] %v1087
          %1154 = vst [vmem:[#allocation3 + $0xe8] sm:$0xff] %v1088
          %1155 = vst [vmem:[#allocation3 + $0xf0] sm:$0xff] %v1091
          %1156 = vst [vmem:[#allocation3 + $0xf8] sm:$0xff] %v1092
        $region84: #{tpu_custom_call.1} parent=55 // pred_fallthru
          _
        %v1157 = vld [vmem:[%s426] sm:$0xf]
        %v1158 = vld [vmem:[#allocation8] sm:$0xff]
        %v1159 = vld [vmem:[#allocation10] sm:$0x3]
        %v1161 = vlaneseq
        %v1162 = vshrl.u32 %v1161, 7
        %v1163 = vsub.s32 0, %v1162
        %v1164 = vrot.slane %v1159, %v1163
        %v1165 = vlaneseq
        %v1166 = vshrl.u32 %v1165, 7
        %v1167 = vsub.s32 1, %v1166
        %v1168 = vrot.slane %v1159, %v1167
        %1171 = vxpose.xlu0.c.b16.start [1/8] %v1157, 128
        %1172 = vxpose.xlu0.c.b16.cont [2/8] 0, 128
        %1173 = vxpose.xlu0.c.b16.cont [3/8] 0, 128
        %1174 = vxpose.xlu0.c.b16.cont [4/8] 0, 128
        %1175 = vxpose.xlu0.c.b16.cont [5/8] 0, 128
        %1176 = vxpose.xlu0.c.b16.cont [6/8] 0, 128
        %1177 = vxpose.xlu0.c.b16.cont [7/8] 0, 128
        %1178 = vxpose.xlu0.c.b16.end [8/8] 0, 128
        %v1179 = vpop.trf.xlu0
        %v1180 = vpop.trf.xlu0
        %v1181 = vpop.trf.xlu0
        %v1182 = vpop.trf.xlu0
        %v1183 = vpop.trf.xlu0
        %v1184 = vpop.trf.xlu0
        %v1185 = vpop.trf.xlu0
        %v1186 = vpop.trf.xlu0
        %v1188 = vunpack.c.l.b16 %v1158
        %v1189 = vunpack.c.h.b16 %v1158
        %v1190 = vpack.c.b16 %v1188, %v1188
        %v1191 = vpack.c.b16 %v1189, %v1189
        %vm1192 = vcmask 64512
        %v1194 = vsel %vm1192, %v1179, 0
        %v1197 = vsel %vm1192, %v1180, 0
        %v1200 = vsel %vm1192, %v1181, 0
        %v1203 = vsel %vm1192, %v1182, 0
        %v1206 = vsel %vm1192, %v1183, 0
        %v1209 = vsel %vm1192, %v1184, 0
        %v1212 = vsel %vm1192, %v1185, 0
        %v1215 = vsel %vm1192, %v1186, 0
        %vm1217 = vcmask 1043456
        %v1219 = vsel %vm1217, %v1190, 0
        %v1222 = vsel %vm1217, %v1191, 0
        %1224 = vmatprep.subr.bf16.mxu0 %v1222
        %1225 = vmatpush1.bf16.msra.mxu0 %v1219
        %1226 = vmatprep.subr.bf16.mxu0 0
        %1227 = vmatpush1.bf16.msra.mxu0 0
        %1228 = vmatprep.subr.bf16.mxu0 0
        %1229 = vmatpush1.bf16.msra.mxu0 0
        %1230 = vmatprep.subr.bf16.mxu0 0
        %1231 = vmatpush1.bf16.msra.mxu0 0
        %1232 = vmatprep.subr.bf16.mxu0 0
        %1233 = vmatpush1.bf16.msra.mxu0 0
        %1234 = vmatprep.subr.bf16.mxu0 0
        %1235 = vmatpush1.bf16.msra.mxu0 0
        %1236 = vmatprep.subr.bf16.mxu0 0
        %1237 = vmatpush1.bf16.msra.mxu0 0
        %1238 = vmatprep.subr.bf16.mxu0 0
        %1239 = vmatpush1.bf16.msra.mxu0 0
        %1240 = vmatprep.subr.bf16.mxu0 0
        %1241 = vmatpush1.bf16.msra.mxu0 0
        %1242 = vmatprep.subr.bf16.mxu0 0
        %1243 = vmatpush1.bf16.msra.mxu0 0
        %1244 = vmatprep.subr.bf16.mxu0 0
        %1245 = vmatpush1.bf16.msra.mxu0 0
        %1246 = vmatprep.subr.bf16.mxu0 0
        %1247 = vmatpush1.bf16.msra.mxu0 0
        %1248 = vmatprep.subr.bf16.mxu0 0
        %1249 = vmatpush1.bf16.msra.mxu0 0
        %1250 = vmatprep.subr.bf16.mxu0 0
        %1251 = vmatpush1.bf16.msra.mxu0 0
        %1252 = vmatprep.subr.bf16.mxu0 0
        %1253 = vmatpush1.bf16.msra.mxu0 0
        %1254 = vmatprep.subr.bf16.mxu0 0
        %1255 = vmatpush1.bf16.msra.mxu0 0
        %1256 = vmatprep.mubr.bf16.mxu0 0
        %1257 = vmatmul.mubr.bf16.gmra.mrb[0].mxu0 %v1194
        %v1258 = vpop.f32.mrb[0].mxu0
        %v1259 = vadd.f32 %v1164, %v1258
        %v1260 = vpop.f32.mrb[0].mxu0
        %v1261 = vadd.f32 %v1168, %v1260
        %v1262 = vpop.f32.mrb[0].mxu0
        %v1263 = vadd.f32 %v1164, %v1262
        %v1264 = vpop.f32.mrb[0].mxu0
        %v1265 = vadd.f32 %v1168, %v1264
        %1266 = vmatprep.mubr.bf16.mxu0 0
        %1267 = vmatmul.mubr.bf16.gmra.mrb[0].mxu0 %v1197
        %v1268 = vpop.f32.mrb[0].mxu0
        %v1269 = vadd.f32 %v1164, %v1268
        %v1270 = vpop.f32.mrb[0].mxu0
        %v1271 = vadd.f32 %v1168, %v1270
        %v1272 = vpop.f32.mrb[0].mxu0
        %v1273 = vadd.f32 %v1164, %v1272
        %v1274 = vpop.f32.mrb[0].mxu0
        %v1275 = vadd.f32 %v1168, %v1274
        %1276 = vmatprep.mubr.bf16.mxu0 0
        %1277 = vmatmul.mubr.bf16.gmra.mrb[0].mxu0 %v1200
        %v1278 = vpop.f32.mrb[0].mxu0
        %v1279 = vadd.f32 %v1164, %v1278
        %v1280 = vpop.f32.mrb[0].mxu0
        %v1281 = vadd.f32 %v1168, %v1280
        %v1282 = vpop.f32.mrb[0].mxu0
        %v1283 = vadd.f32 %v1164, %v1282
        %v1284 = vpop.f32.mrb[0].mxu0
        %v1285 = vadd.f32 %v1168, %v1284
        %1286 = vmatprep.mubr.bf16.mxu0 0
        %1287 = vmatmul.mubr.bf16.gmra.mrb[0].mxu0 %v1203
        %v1288 = vpop.f32.mrb[0].mxu0
        %v1289 = vadd.f32 %v1164, %v1288
        %v1290 = vpop.f32.mrb[0].mxu0
        %v1291 = vadd.f32 %v1168, %v1290
        %v1292 = vpop.f32.mrb[0].mxu0
        %v1293 = vadd.f32 %v1164, %v1292
        %v1294 = vpop.f32.mrb[0].mxu0
        %v1295 = vadd.f32 %v1168, %v1294
        %1296 = vmatprep.mubr.bf16.mxu0 0
        %1297 = vmatmul.mubr.bf16.gmra.mrb[0].mxu0 %v1206
        %v1298 = vpop.f32.mrb[0].mxu0
        %v1299 = vadd.f32 %v1164, %v1298
        %v1300 = vpop.f32.mrb[0].mxu0
        %v1301 = vadd.f32 %v1168, %v1300
        %v1302 = vpop.f32.mrb[0].mxu0
        %v1303 = vadd.f32 %v1164, %v1302
        %v1304 = vpop.f32.mrb[0].mxu0
        %v1305 = vadd.f32 %v1168, %v1304
        %1306 = vmatprep.mubr.bf16.mxu0 0
        %1307 = vmatmul.mubr.bf16.gmra.mrb[0].mxu0 %v1209
        %v1308 = vpop.f32.mrb[0].mxu0
        %v1309 = vadd.f32 %v1164, %v1308
        %v1310 = vpop.f32.mrb[0].mxu0
        %v1311 = vadd.f32 %v1168, %v1310
        %v1312 = vpop.f32.mrb[0].mxu0
        %v1313 = vadd.f32 %v1164, %v1312
        %v1314 = vpop.f32.mrb[0].mxu0
        %v1315 = vadd.f32 %v1168, %v1314
        %1316 = vmatprep.mubr.bf16.mxu0 0
        %1317 = vmatmul.mubr.bf16.gmra.mrb[0].mxu0 %v1212
        %v1318 = vpop.f32.mrb[0].mxu0
        %v1319 = vadd.f32 %v1164, %v1318
        %v1320 = vpop.f32.mrb[0].mxu0
        %v1321 = vadd.f32 %v1168, %v1320
        %v1322 = vpop.f32.mrb[0].mxu0
        %v1323 = vadd.f32 %v1164, %v1322
        %v1324 = vpop.f32.mrb[0].mxu0
        %v1325 = vadd.f32 %v1168, %v1324
        %1326 = vmatprep.mubr.bf16.mxu0 0
        %1327 = vmatmul.mubr.bf16.gmra.mrb[0].mxu0 %v1215
        %v1328 = vpop.f32.mrb[0].mxu0
        %v1329 = vadd.f32 %v1164, %v1328
        %v1330 = vpop.f32.mrb[0].mxu0
        %v1331 = vadd.f32 %v1168, %v1330
        %v1332 = vpop.f32.mrb[0].mxu0
        %v1333 = vadd.f32 %v1164, %v1332
        %v1334 = vpop.f32.mrb[0].mxu0
        %v1335 = vadd.f32 %v1168, %v1334
        %1336 = vdwg.mxu0
        %v1337 = vpack.c.bf16 %v1263, %v1259
        %v1338 = vpack.c.bf16 %v1265, %v1261
        %v1339 = vpack.c.bf16 %v1273, %v1269
        %v1340 = vpack.c.bf16 %v1275, %v1271
        %v1341 = vpack.c.bf16 %v1283, %v1279
        %v1342 = vpack.c.bf16 %v1285, %v1281
        %v1343 = vpack.c.bf16 %v1293, %v1289
        %v1344 = vpack.c.bf16 %v1295, %v1291
        %v1345 = vpack.c.bf16 %v1303, %v1299
        %v1346 = vpack.c.bf16 %v1305, %v1301
        %v1347 = vpack.c.bf16 %v1313, %v1309
        %v1348 = vpack.c.bf16 %v1315, %v1311
        %v1349 = vpack.c.bf16 %v1323, %v1319
        %v1350 = vpack.c.bf16 %v1325, %v1321
        %v1351 = vpack.c.bf16 %v1333, %v1329
        %v1352 = vpack.c.bf16 %v1335, %v1331
        %v1353 = vld [vmem:[#allocation2] sm:$0xff]
        %v1354 = vld [vmem:[#allocation2 + $0x10] sm:$0xff]
        %v1355 = vld [vmem:[#allocation2 + $0x20] sm:$0xff]
        %v1356 = vld [vmem:[#allocation2 + $0x30] sm:$0xff]
        %v1357 = vld [vmem:[#allocation2 + $0x40] sm:$0xff]
        %v1358 = vld [vmem:[#allocation2 + $0x50] sm:$0xff]
        %v1359 = vld [vmem:[#allocation2 + $0x60] sm:$0xff]
        %v1360 = vld [vmem:[#allocation2 + $0x70] sm:$0xff]
        %v1361 = vld [vmem:[#allocation2 + $0x80] sm:$0xff]
        %v1362 = vld [vmem:[#allocation2 + $0x90] sm:$0xff]
        %v1363 = vld [vmem:[#allocation2 + $0xa0] sm:$0xff]
        %v1364 = vld [vmem:[#allocation2 + $0xb0] sm:$0xff]
        %v1365 = vld [vmem:[#allocation2 + $0xc0] sm:$0xff]
        %v1366 = vld [vmem:[#allocation2 + $0xd0] sm:$0xff]
        %v1367 = vld [vmem:[#allocation2 + $0xe0] sm:$0xff]
        %v1368 = vld [vmem:[#allocation2 + $0xf0] sm:$0xff]
        %v1369 = vld [vmem:[#allocation3] sm:$0xff]
        %v1370 = vld [vmem:[#allocation3 + $0x10] sm:$0xff]
        %v1371 = vld [vmem:[#allocation3 + $0x20] sm:$0xff]
        %v1372 = vld [vmem:[#allocation3 + $0x30] sm:$0xff]
        %v1373 = vld [vmem:[#allocation3 + $0x40] sm:$0xff]
        %v1374 = vld [vmem:[#allocation3 + $0x50] sm:$0xff]
        %v1375 = vld [vmem:[#allocation3 + $0x60] sm:$0xff]
        %v1376 = vld [vmem:[#allocation3 + $0x70] sm:$0xff]
        %v1377 = vld [vmem:[#allocation3 + $0x80] sm:$0xff]
        %v1378 = vld [vmem:[#allocation3 + $0x90] sm:$0xff]
        %v1379 = vld [vmem:[#allocation3 + $0xa0] sm:$0xff]
        %v1380 = vld [vmem:[#allocation3 + $0xb0] sm:$0xff]
        %v1381 = vld [vmem:[#allocation3 + $0xc0] sm:$0xff]
        %v1382 = vld [vmem:[#allocation3 + $0xd0] sm:$0xff]
        %v1383 = vld [vmem:[#allocation3 + $0xe0] sm:$0xff]
        %v1384 = vld [vmem:[#allocation3 + $0xf0] sm:$0xff]
        %v1385 = vld [vmem:[%s447] sm:$0xff]
        %v1386 = vld [vmem:[%s447 + $0x8] sm:$0xff]
        %v1387 = vld [vmem:[%s447 + $0x10] sm:$0xff]
        %v1388 = vld [vmem:[%s447 + $0x18] sm:$0xff]
        %v1389 = vld [vmem:[%s447 + $0x20] sm:$0xff]
        %v1390 = vld [vmem:[%s447 + $0x28] sm:$0xff]
        %v1391 = vld [vmem:[%s447 + $0x30] sm:$0xff]
        %v1392 = vld [vmem:[%s447 + $0x38] sm:$0xff]
        %v1393 = vld [vmem:[%s447 + $0x40] sm:$0xff]
        %v1394 = vld [vmem:[%s447 + $0x48] sm:$0xff]
        %v1395 = vld [vmem:[%s447 + $0x50] sm:$0xff]
        %v1396 = vld [vmem:[%s447 + $0x58] sm:$0xff]
        %v1397 = vld [vmem:[%s447 + $0x60] sm:$0xff]
        %v1398 = vld [vmem:[%s447 + $0x68] sm:$0xff]
        %v1399 = vld [vmem:[%s447 + $0x70] sm:$0xff]
        %v1400 = vld [vmem:[%s447 + $0x78] sm:$0xff]
        %v1401 = vunpack.c.l.bf16 %v1385
        %v1402 = vunpack.c.h.bf16 %v1385
        %v1403 = vunpack.c.l.bf16 %v1386
        %v1404 = vunpack.c.h.bf16 %v1386
        %v1405 = vunpack.c.l.bf16 %v1387
        %v1406 = vunpack.c.h.bf16 %v1387
        %v1407 = vunpack.c.l.bf16 %v1388
        %v1408 = vunpack.c.h.bf16 %v1388
        %v1409 = vunpack.c.l.bf16 %v1389
        %v1410 = vunpack.c.h.bf16 %v1389
        %v1411 = vunpack.c.l.bf16 %v1390
        %v1412 = vunpack.c.h.bf16 %v1390
        %v1413 = vunpack.c.l.bf16 %v1391
        %v1414 = vunpack.c.h.bf16 %v1391
        %v1415 = vunpack.c.l.bf16 %v1392
        %v1416 = vunpack.c.h.bf16 %v1392
        %v1417 = vunpack.c.l.bf16 %v1393
        %v1418 = vunpack.c.h.bf16 %v1393
        %v1419 = vunpack.c.l.bf16 %v1394
        %v1420 = vunpack.c.h.bf16 %v1394
        %v1421 = vunpack.c.l.bf16 %v1395
        %v1422 = vunpack.c.h.bf16 %v1395
        %v1423 = vunpack.c.l.bf16 %v1396
        %v1424 = vunpack.c.h.bf16 %v1396
        %v1425 = vunpack.c.l.bf16 %v1397
        %v1426 = vunpack.c.h.bf16 %v1397
        %v1427 = vunpack.c.l.bf16 %v1398
        %v1428 = vunpack.c.h.bf16 %v1398
        %v1429 = vunpack.c.l.bf16 %v1399
        %v1430 = vunpack.c.h.bf16 %v1399
        %v1431 = vunpack.c.l.bf16 %v1400
        %v1432 = vunpack.c.h.bf16 %v1400
        %1433 = vmatprep.subr.bf16.mxu0 0
        %1434 = vmatpush1.bf16.xpose.msra.mxu0 %v1353
        %1435 = vmatprep.subr.bf16.mxu0 0
        %1436 = vmatpush1.bf16.xpose.msra.mxu0 %v1354
        %1437 = vmatprep.subr.bf16.mxu0 0
        %1438 = vmatpush1.bf16.xpose.msra.mxu0 %v1355
        %1439 = vmatprep.subr.bf16.mxu0 0
        %1440 = vmatpush1.bf16.xpose.msra.mxu0 %v1356
        %1441 = vmatprep.subr.bf16.mxu0 0
        %1442 = vmatpush1.bf16.xpose.msra.mxu0 %v1357
        %1443 = vmatprep.subr.bf16.mxu0 0
        %1444 = vmatpush1.bf16.xpose.msra.mxu0 %v1358
        %1445 = vmatprep.subr.bf16.mxu0 0
        %1446 = vmatpush1.bf16.xpose.msra.mxu0 %v1359
        %1447 = vmatprep.subr.bf16.mxu0 0
        %1448 = vmatpush1.bf16.xpose.msra.mxu0 %v1360
        %1449 = vmatprep.subr.bf16.mxu0 0
        %1450 = vmatpush1.bf16.xpose.msra.mxu0 %v1361
        %1451 = vmatprep.subr.bf16.mxu0 0
        %1452 = vmatpush1.bf16.xpose.msra.mxu0 %v1362
        %1453 = vmatprep.subr.bf16.mxu0 0
        %1454 = vmatpush1.bf16.xpose.msra.mxu0 %v1363
        %1455 = vmatprep.subr.bf16.mxu0 0
        %1456 = vmatpush1.bf16.xpose.msra.mxu0 %v1364
        %1457 = vmatprep.subr.bf16.mxu0 0
        %1458 = vmatpush1.bf16.xpose.msra.mxu0 %v1365
        %1459 = vmatprep.subr.bf16.mxu0 0
        %1460 = vmatpush1.bf16.xpose.msra.mxu0 %v1366
        %1461 = vmatprep.subr.bf16.mxu0 0
        %1462 = vmatpush1.bf16.xpose.msra.mxu0 %v1367
        %1463 = vmatprep.subr.bf16.mxu0 0
        %1464 = vmatpush1.bf16.xpose.msra.mxu0 %v1368
        %1465 = vmatprep.mubr.bf16.mxu0 0
        %1466 = vmatmul.mubr.bf16.gmra.mrb[0].mxu0 %v1337
        %v1467 = vpop.f32.mrb[0].mxu0
        %v1468 = vadd.f32 %v1401, %v1467
        %v1469 = vpop.f32.mrb[0].mxu0
        %v1470 = vadd.f32 %v1402, %v1469
        %v1471 = vpop.f32.mrb[0].mxu0
        %v1472 = vadd.f32 %v1403, %v1471
        %v1473 = vpop.f32.mrb[0].mxu0
        %v1474 = vadd.f32 %v1404, %v1473
        %1475 = vmatprep.mubr.bf16.mxu0 0
        %1476 = vmatmul.mubr.bf16.gmra.mrb[0].mxu0 %v1339
        %v1477 = vpop.f32.mrb[0].mxu0
        %v1478 = vadd.f32 %v1405, %v1477
        %v1479 = vpop.f32.mrb[0].mxu0
        %v1480 = vadd.f32 %v1406, %v1479
        %v1481 = vpop.f32.mrb[0].mxu0
        %v1482 = vadd.f32 %v1407, %v1481
        %v1483 = vpop.f32.mrb[0].mxu0
        %v1484 = vadd.f32 %v1408, %v1483
        %1485 = vmatprep.mubr.bf16.mxu0 0
        %1486 = vmatmul.mubr.bf16.gmra.mrb[0].mxu0 %v1341
        %v1487 = vpop.f32.mrb[0].mxu0
        %v1488 = vadd.f32 %v1409, %v1487
        %v1489 = vpop.f32.mrb[0].mxu0
        %v1490 = vadd.f32 %v1410, %v1489
        %v1491 = vpop.f32.mrb[0].mxu0
        %v1492 = vadd.f32 %v1411, %v1491
        %v1493 = vpop.f32.mrb[0].mxu0
        %v1494 = vadd.f32 %v1412, %v1493
        %1495 = vmatprep.mubr.bf16.mxu0 0
        %1496 = vmatmul.mubr.bf16.gmra.mrb[0].mxu0 %v1343
        %v1497 = vpop.f32.mrb[0].mxu0
        %v1498 = vadd.f32 %v1413, %v1497
        %v1499 = vpop.f32.mrb[0].mxu0
        %v1500 = vadd.f32 %v1414, %v1499
        %v1501 = vpop.f32.mrb[0].mxu0
        %v1502 = vadd.f32 %v1415, %v1501
        %v1503 = vpop.f32.mrb[0].mxu0
        %v1504 = vadd.f32 %v1416, %v1503
        %1505 = vmatprep.mubr.bf16.mxu0 0
        %1506 = vmatmul.mubr.bf16.gmra.mrb[0].mxu0 %v1345
        %v1507 = vpop.f32.mrb[0].mxu0
        %v1508 = vadd.f32 %v1417, %v1507
        %v1509 = vpop.f32.mrb[0].mxu0
        %v1510 = vadd.f32 %v1418, %v1509
        %v1511 = vpop.f32.mrb[0].mxu0
        %v1512 = vadd.f32 %v1419, %v1511
        %v1513 = vpop.f32.mrb[0].mxu0
        %v1514 = vadd.f32 %v1420, %v1513
        %1515 = vmatprep.mubr.bf16.mxu0 0
        %1516 = vmatmul.mubr.bf16.gmra.mrb[0].mxu0 %v1347
        %v1517 = vpop.f32.mrb[0].mxu0
        %v1518 = vadd.f32 %v1421, %v1517
        %v1519 = vpop.f32.mrb[0].mxu0
        %v1520 = vadd.f32 %v1422, %v1519
        %v1521 = vpop.f32.mrb[0].mxu0
        %v1522 = vadd.f32 %v1423, %v1521
        %v1523 = vpop.f32.mrb[0].mxu0
        %v1524 = vadd.f32 %v1424, %v1523
        %1525 = vmatprep.mubr.bf16.mxu0 0
        %1526 = vmatmul.mubr.bf16.gmra.mrb[0].mxu0 %v1349
        %v1527 = vpop.f32.mrb[0].mxu0
        %v1528 = vadd.f32 %v1425, %v1527
        %v1529 = vpop.f32.mrb[0].mxu0
        %v1530 = vadd.f32 %v1426, %v1529
        %v1531 = vpop.f32.mrb[0].mxu0
        %v1532 = vadd.f32 %v1427, %v1531
        %v1533 = vpop.f32.mrb[0].mxu0
        %v1534 = vadd.f32 %v1428, %v1533
        %1535 = vmatprep.mubr.bf16.mxu0 0
        %1536 = vmatmul.mubr.bf16.gmra.mrb[0].mxu0 %v1351
        %v1537 = vpop.f32.mrb[0].mxu0
        %v1538 = vadd.f32 %v1429, %v1537
        %v1539 = vpop.f32.mrb[0].mxu0
        %v1540 = vadd.f32 %v1430, %v1539
        %v1541 = vpop.f32.mrb[0].mxu0
        %v1542 = vadd.f32 %v1431, %v1541
        %v1543 = vpop.f32.mrb[0].mxu0
        %v1544 = vadd.f32 %v1432, %v1543
        %1545 = vdwg.mxu0
        %v1546 = vmax.f32 %v1468, %v1470
        %1547 = vmax.xlane.f32.xlu0 %v1546
        %v1548 = vpop.xlane.xlu0 %1547
        %v1549 = vmax.f32 %v1472, %v1474
        %1550 = vmax.xlane.f32.xlu0 %v1549
        %v1551 = vpop.xlane.xlu0 %1550
        %v1552 = vmax.f32 %v1478, %v1480
        %1553 = vmax.xlane.f32.xlu0 %v1552
        %v1554 = vpop.xlane.xlu0 %1553
        %v1555 = vmax.f32 %v1482, %v1484
        %1556 = vmax.xlane.f32.xlu0 %v1555
        %v1557 = vpop.xlane.xlu0 %1556
        %v1558 = vmax.f32 %v1488, %v1490
        %1559 = vmax.xlane.f32.xlu0 %v1558
        %v1560 = vpop.xlane.xlu0 %1559
        %v1561 = vmax.f32 %v1492, %v1494
        %1562 = vmax.xlane.f32.xlu0 %v1561
        %v1563 = vpop.xlane.xlu0 %1562
        %v1564 = vmax.f32 %v1498, %v1500
        %1565 = vmax.xlane.f32.xlu0 %v1564
        %v1566 = vpop.xlane.xlu0 %1565
        %v1567 = vmax.f32 %v1502, %v1504
        %1568 = vmax.xlane.f32.xlu0 %v1567
        %v1569 = vpop.xlane.xlu0 %1568
        %v1570 = vmax.f32 %v1508, %v1510
        %1571 = vmax.xlane.f32.xlu0 %v1570
        %v1572 = vpop.xlane.xlu0 %1571
        %v1573 = vmax.f32 %v1512, %v1514
        %1574 = vmax.xlane.f32.xlu0 %v1573
        %v1575 = vpop.xlane.xlu0 %1574
        %v1576 = vmax.f32 %v1518, %v1520
        %1577 = vmax.xlane.f32.xlu0 %v1576
        %v1578 = vpop.xlane.xlu0 %1577
        %v1579 = vmax.f32 %v1522, %v1524
        %1580 = vmax.xlane.f32.xlu0 %v1579
        %v1581 = vpop.xlane.xlu0 %1580
        %v1582 = vmax.f32 %v1528, %v1530
        %1583 = vmax.xlane.f32.xlu0 %v1582
        %v1584 = vpop.xlane.xlu0 %1583
        %v1585 = vmax.f32 %v1532, %v1534
        %1586 = vmax.xlane.f32.xlu0 %v1585
        %v1587 = vpop.xlane.xlu0 %1586
        %v1588 = vmax.f32 %v1538, %v1540
        %1589 = vmax.xlane.f32.xlu0 %v1588
        %v1590 = vpop.xlane.xlu0 %1589
        %v1591 = vmax.f32 %v1542, %v1544
        %1592 = vmax.xlane.f32.xlu0 %v1591
        %v1593 = vpop.xlane.xlu0 %1592
        %v1594 = vsub.f32 %v1468, %v1548
        %v1595 = vsub.f32 %v1470, %v1548
        %v1596 = vsub.f32 %v1472, %v1551
        %v1597 = vsub.f32 %v1474, %v1551
        %v1598 = vsub.f32 %v1478, %v1554
        %v1599 = vsub.f32 %v1480, %v1554
        %v1600 = vsub.f32 %v1482, %v1557
        %v1601 = vsub.f32 %v1484, %v1557
        %v1602 = vsub.f32 %v1488, %v1560
        %v1603 = vsub.f32 %v1490, %v1560
        %v1604 = vsub.f32 %v1492, %v1563
        %v1605 = vsub.f32 %v1494, %v1563
        %v1606 = vsub.f32 %v1498, %v1566
        %v1607 = vsub.f32 %v1500, %v1566
        %v1608 = vsub.f32 %v1502, %v1569
        %v1609 = vsub.f32 %v1504, %v1569
        %v1610 = vsub.f32 %v1508, %v1572
        %v1611 = vsub.f32 %v1510, %v1572
        %v1612 = vsub.f32 %v1512, %v1575
        %v1613 = vsub.f32 %v1514, %v1575
        %v1614 = vsub.f32 %v1518, %v1578
        %v1615 = vsub.f32 %v1520, %v1578
        %v1616 = vsub.f32 %v1522, %v1581
        %v1617 = vsub.f32 %v1524, %v1581
        %v1618 = vsub.f32 %v1528, %v1584
        %v1619 = vsub.f32 %v1530, %v1584
        %v1620 = vsub.f32 %v1532, %v1587
        %v1621 = vsub.f32 %v1534, %v1587
        %v1622 = vsub.f32 %v1538, %v1590
        %v1623 = vsub.f32 %v1540, %v1590
        %v1624 = vsub.f32 %v1542, %v1593
        %v1625 = vsub.f32 %v1544, %v1593
        %v1626 = vmul.f32 %v1594, 1.442695
        %v1627 = vpow.pop %v1626
        %v1628 = vmul.f32 %v1595, 1.442695
        %v1629 = vpow.pop %v1628
        %v1630 = vmul.f32 %v1596, 1.442695
        %v1631 = vpow.pop %v1630
        %v1632 = vmul.f32 %v1597, 1.442695
        %v1633 = vpow.pop %v1632
        %v1634 = vmul.f32 %v1598, 1.442695
        %v1635 = vpow.pop %v1634
        %v1636 = vmul.f32 %v1599, 1.442695
        %v1637 = vpow.pop %v1636
        %v1638 = vmul.f32 %v1600, 1.442695
        %v1639 = vpow.pop %v1638
        %v1640 = vmul.f32 %v1601, 1.442695
        %v1641 = vpow.pop %v1640
        %v1642 = vmul.f32 %v1602, 1.442695
        %v1643 = vpow.pop %v1642
        %v1644 = vmul.f32 %v1603, 1.442695
        %v1645 = vpow.pop %v1644
        %v1646 = vmul.f32 %v1604, 1.442695
        %v1647 = vpow.pop %v1646
        %v1648 = vmul.f32 %v1605, 1.442695
        %v1649 = vpow.pop %v1648
        %v1650 = vmul.f32 %v1606, 1.442695
        %v1651 = vpow.pop %v1650
        %v1652 = vmul.f32 %v1607, 1.442695
        %v1653 = vpow.pop %v1652
        %v1654 = vmul.f32 %v1608, 1.442695
        %v1655 = vpow.pop %v1654
        %v1656 = vmul.f32 %v1609, 1.442695
        %v1657 = vpow.pop %v1656
        %v1658 = vmul.f32 %v1610, 1.442695
        %v1659 = vpow.pop %v1658
        %v1660 = vmul.f32 %v1611, 1.442695
        %v1661 = vpow.pop %v1660
        %v1662 = vmul.f32 %v1612, 1.442695
        %v1663 = vpow.pop %v1662
        %v1664 = vmul.f32 %v1613, 1.442695
        %v1665 = vpow.pop %v1664
        %v1666 = vmul.f32 %v1614, 1.442695
        %v1667 = vpow.pop %v1666
        %v1668 = vmul.f32 %v1615, 1.442695
        %v1669 = vpow.pop %v1668
        %v1670 = vmul.f32 %v1616, 1.442695
        %v1671 = vpow.pop %v1670
        %v1672 = vmul.f32 %v1617, 1.442695
        %v1673 = vpow.pop %v1672
        %v1674 = vmul.f32 %v1618, 1.442695
        %v1675 = vpow.pop %v1674
        %v1676 = vmul.f32 %v1619, 1.442695
        %v1677 = vpow.pop %v1676
        %v1678 = vmul.f32 %v1620, 1.442695
        %v1679 = vpow.pop %v1678
        %v1680 = vmul.f32 %v1621, 1.442695
        %v1681 = vpow.pop %v1680
        %v1682 = vmul.f32 %v1622, 1.442695
        %v1683 = vpow.pop %v1682
        %v1684 = vmul.f32 %v1623, 1.442695
        %v1685 = vpow.pop %v1684
        %v1686 = vmul.f32 %v1624, 1.442695
        %v1687 = vpow.pop %v1686
        %v1688 = vmul.f32 %v1625, 1.442695
        %v1689 = vpow.pop %v1688
        %v1690 = vadd.f32 %v1627, %v1629
        %1691 = vadd.xlane.f32.xlu0 %v1690
        %v1692 = vpop.xlane.xlu0 %1691
        %v1693 = vadd.f32 %v1631, %v1633
        %1694 = vadd.xlane.f32.xlu0 %v1693
        %v1695 = vpop.xlane.xlu0 %1694
        %v1696 = vadd.f32 %v1635, %v1637
        %1697 = vadd.xlane.f32.xlu0 %v1696
        %v1698 = vpop.xlane.xlu0 %1697
        %v1699 = vadd.f32 %v1639, %v1641
        %1700 = vadd.xlane.f32.xlu0 %v1699
        %v1701 = vpop.xlane.xlu0 %1700
        %v1702 = vadd.f32 %v1643, %v1645
        %1703 = vadd.xlane.f32.xlu0 %v1702
        %v1704 = vpop.xlane.xlu0 %1703
        %v1705 = vadd.f32 %v1647, %v1649
        %1706 = vadd.xlane.f32.xlu0 %v1705
        %v1707 = vpop.xlane.xlu0 %1706
        %v1708 = vadd.f32 %v1651, %v1653
        %1709 = vadd.xlane.f32.xlu0 %v1708
        %v1710 = vpop.xlane.xlu0 %1709
        %v1711 = vadd.f32 %v1655, %v1657
        %1712 = vadd.xlane.f32.xlu0 %v1711
        %v1713 = vpop.xlane.xlu0 %1712
        %v1714 = vadd.f32 %v1659, %v1661
        %1715 = vadd.xlane.f32.xlu0 %v1714
        %v1716 = vpop.xlane.xlu0 %1715
        %v1717 = vadd.f32 %v1663, %v1665
        %1718 = vadd.xlane.f32.xlu0 %v1717
        %v1719 = vpop.xlane.xlu0 %1718
        %v1720 = vadd.f32 %v1667, %v1669
        %1721 = vadd.xlane.f32.xlu0 %v1720
        %v1722 = vpop.xlane.xlu0 %1721
        %v1723 = vadd.f32 %v1671, %v1673
        %1724 = vadd.xlane.f32.xlu0 %v1723
        %v1725 = vpop.xlane.xlu0 %1724
        %v1726 = vadd.f32 %v1675, %v1677
        %1727 = vadd.xlane.f32.xlu0 %v1726
        %v1728 = vpop.xlane.xlu0 %1727
        %v1729 = vadd.f32 %v1679, %v1681
        %1730 = vadd.xlane.f32.xlu0 %v1729
        %v1731 = vpop.xlane.xlu0 %1730
        %v1732 = vadd.f32 %v1683, %v1685
        %1733 = vadd.xlane.f32.xlu0 %v1732
        %v1734 = vpop.xlane.xlu0 %1733
        %v1735 = vadd.f32 %v1687, %v1689
        %1736 = vadd.xlane.f32.xlu0 %v1735
        %v1737 = vpop.xlane.xlu0 %1736
        %v1738 = vrcp.pop %v1692
        %v1739 = vrcp.pop %v1695
        %v1740 = vrcp.pop %v1698
        %v1741 = vrcp.pop %v1701
        %v1742 = vrcp.pop %v1704
        %v1743 = vrcp.pop %v1707
        %v1744 = vrcp.pop %v1710
        %v1745 = vrcp.pop %v1713
        %v1746 = vrcp.pop %v1716
        %v1747 = vrcp.pop %v1719
        %v1748 = vrcp.pop %v1722
        %v1749 = vrcp.pop %v1725
        %v1750 = vrcp.pop %v1728
        %v1751 = vrcp.pop %v1731
        %v1752 = vrcp.pop %v1734
        %v1753 = vrcp.pop %v1737
        %v1754 = vpack.c.bf16 %v1631, %v1627
        %v1755 = vpack.c.bf16 %v1633, %v1629
        %v1756 = vpack.c.bf16 %v1639, %v1635
        %v1757 = vpack.c.bf16 %v1641, %v1637
        %v1758 = vpack.c.bf16 %v1647, %v1643
        %v1759 = vpack.c.bf16 %v1649, %v1645
        %v1760 = vpack.c.bf16 %v1655, %v1651
        %v1761 = vpack.c.bf16 %v1657, %v1653
        %v1762 = vpack.c.bf16 %v1663, %v1659
        %v1763 = vpack.c.bf16 %v1665, %v1661
        %v1764 = vpack.c.bf16 %v1671, %v1667
        %v1765 = vpack.c.bf16 %v1673, %v1669
        %v1766 = vpack.c.bf16 %v1679, %v1675
        %v1767 = vpack.c.bf16 %v1681, %v1677
        %v1768 = vpack.c.bf16 %v1687, %v1683
        %v1769 = vpack.c.bf16 %v1689, %v1685
        %1770 = vmatprep.subr.bf16.mxu0 0
        %1771 = vmatpush1.bf16.msra.mxu0 %v1369
        %1772 = vmatprep.subr.bf16.mxu0 0
        %1773 = vmatpush1.bf16.msra.mxu0 %v1370
        %1774 = vmatprep.subr.bf16.mxu0 0
        %1775 = vmatpush1.bf16.msra.mxu0 %v1371
        %1776 = vmatprep.subr.bf16.mxu0 0
        %1777 = vmatpush1.bf16.msra.mxu0 %v1372
        %1778 = vmatprep.subr.bf16.mxu0 0
        %1779 = vmatpush1.bf16.msra.mxu0 %v1373
        %1780 = vmatprep.subr.bf16.mxu0 0
        %1781 = vmatpush1.bf16.msra.mxu0 %v1374
        %1782 = vmatprep.subr.bf16.mxu0 0
        %1783 = vmatpush1.bf16.msra.mxu0 %v1375
        %1784 = vmatprep.subr.bf16.mxu0 0
        %1785 = vmatpush1.bf16.msra.mxu0 %v1376
        %1786 = vmatprep.subr.bf16.mxu0 0
        %1787 = vmatpush1.bf16.msra.mxu0 %v1377
        %1788 = vmatprep.subr.bf16.mxu0 0
        %1789 = vmatpush1.bf16.msra.mxu0 %v1378
        %1790 = vmatprep.subr.bf16.mxu0 0
        %1791 = vmatpush1.bf16.msra.mxu0 %v1379
        %1792 = vmatprep.subr.bf16.mxu0 0
        %1793 = vmatpush1.bf16.msra.mxu0 %v1380
        %1794 = vmatprep.subr.bf16.mxu0 0
        %1795 = vmatpush1.bf16.msra.mxu0 %v1381
        %1796 = vmatprep.subr.bf16.mxu0 0
        %1797 = vmatpush1.bf16.msra.mxu0 %v1382
        %1798 = vmatprep.subr.bf16.mxu0 0
        %1799 = vmatpush1.bf16.msra.mxu0 %v1383
        %1800 = vmatprep.subr.bf16.mxu0 0
        %1801 = vmatpush1.bf16.msra.mxu0 %v1384
        %1802 = vmatprep.mubr.bf16.mxu0 %v1755
        %1803 = vmatmul.mubr.bf16.gmra.mrb[0].mxu0 %v1754
        %v1804 = vpop.f32.mrb[0].mxu0
        %v1805 = vadd.f32 0.0, %v1804
        %v1806 = vpop.f32.mrb[0].mxu0
        %v1807 = vpop.f32.mrb[0].mxu0
        %v1808 = vadd.f32 0.0, %v1807
        %v1809 = vpop.f32.mrb[0].mxu0
        %1810 = vmatprep.mubr.bf16.mxu0 %v1757
        %1811 = vmatmul.mubr.bf16.gmra.mrb[0].mxu0 %v1756
        %v1812 = vpop.f32.mrb[0].mxu0
        %v1813 = vadd.f32 0.0, %v1812
        %v1814 = vpop.f32.mrb[0].mxu0
        %v1815 = vpop.f32.mrb[0].mxu0
        %v1816 = vadd.f32 0.0, %v1815
        %v1817 = vpop.f32.mrb[0].mxu0
        %1818 = vmatprep.mubr.bf16.mxu0 %v1759
        %1819 = vmatmul.mubr.bf16.gmra.mrb[0].mxu0 %v1758
        %v1820 = vpop.f32.mrb[0].mxu0
        %v1821 = vadd.f32 0.0, %v1820
        %v1822 = vpop.f32.mrb[0].mxu0
        %v1823 = vpop.f32.mrb[0].mxu0
        %v1824 = vadd.f32 0.0, %v1823
        %v1825 = vpop.f32.mrb[0].mxu0
        %1826 = vmatprep.mubr.bf16.mxu0 %v1761
        %1827 = vmatmul.mubr.bf16.gmra.mrb[0].mxu0 %v1760
        %v1828 = vpop.f32.mrb[0].mxu0
        %v1829 = vadd.f32 0.0, %v1828
        %v1830 = vpop.f32.mrb[0].mxu0
        %v1831 = vpop.f32.mrb[0].mxu0
        %v1832 = vadd.f32 0.0, %v1831
        %v1833 = vpop.f32.mrb[0].mxu0
        %1834 = vmatprep.mubr.bf16.mxu0 %v1763
        %1835 = vmatmul.mubr.bf16.gmra.mrb[0].mxu0 %v1762
        %v1836 = vpop.f32.mrb[0].mxu0
        %v1837 = vadd.f32 0.0, %v1836
        %v1838 = vpop.f32.mrb[0].mxu0
        %v1839 = vpop.f32.mrb[0].mxu0
        %v1840 = vadd.f32 0.0, %v1839
        %v1841 = vpop.f32.mrb[0].mxu0
        %1842 = vmatprep.mubr.bf16.mxu0 %v1765
        %1843 = vmatmul.mubr.bf16.gmra.mrb[0].mxu0 %v1764
        %v1844 = vpop.f32.mrb[0].mxu0
        %v1845 = vadd.f32 0.0, %v1844
        %v1846 = vpop.f32.mrb[0].mxu0
        %v1847 = vpop.f32.mrb[0].mxu0
        %v1848 = vadd.f32 0.0, %v1847
        %v1849 = vpop.f32.mrb[0].mxu0
        %1850 = vmatprep.mubr.bf16.mxu0 %v1767
        %1851 = vmatmul.mubr.bf16.gmra.mrb[0].mxu0 %v1766
        %v1852 = vpop.f32.mrb[0].mxu0
        %v1853 = vadd.f32 0.0, %v1852
        %v1854 = vpop.f32.mrb[0].mxu0
        %v1855 = vpop.f32.mrb[0].mxu0
        %v1856 = vadd.f32 0.0, %v1855
        %v1857 = vpop.f32.mrb[0].mxu0
        %1858 = vmatprep.mubr.bf16.mxu0 %v1769
        %1859 = vmatmul.mubr.bf16.gmra.mrb[0].mxu0 %v1768
        %v1860 = vpop.f32.mrb[0].mxu0
        %v1861 = vadd.f32 0.0, %v1860
        %v1862 = vpop.f32.mrb[0].mxu0
        %v1863 = vpop.f32.mrb[0].mxu0
        %v1864 = vadd.f32 0.0, %v1863
        %v1865 = vpop.f32.mrb[0].mxu0
        %1866 = vdwg.mxu0
        %v1867 = vmul.f32 %v1805, %v1738
        %v1868 = vmul.f32 %v1808, %v1739
        %v1869 = vmul.f32 %v1813, %v1740
        %v1870 = vmul.f32 %v1816, %v1741
        %v1871 = vmul.f32 %v1821, %v1742
        %v1872 = vmul.f32 %v1824, %v1743
        %v1873 = vmul.f32 %v1829, %v1744
        %v1874 = vmul.f32 %v1832, %v1745
        %v1875 = vmul.f32 %v1837, %v1746
        %v1876 = vmul.f32 %v1840, %v1747
        %v1877 = vmul.f32 %v1845, %v1748
        %v1878 = vmul.f32 %v1848, %v1749
        %v1879 = vmul.f32 %v1853, %v1750
        %v1880 = vmul.f32 %v1856, %v1751
        %v1881 = vmul.f32 %v1861, %v1752
        %v1882 = vmul.f32 %v1864, %v1753
        %v1883 = vpack.c.bf16 %v1868, %v1867
        %v1884 = vpack.c.bf16 %v1870, %v1869
        %v1885 = vpack.c.bf16 %v1872, %v1871
        %v1886 = vpack.c.bf16 %v1874, %v1873
        %v1887 = vpack.c.bf16 %v1876, %v1875
        %v1888 = vpack.c.bf16 %v1878, %v1877
        %v1889 = vpack.c.bf16 %v1880, %v1879
        %v1890 = vpack.c.bf16 %v1882, %v1881
        %1891 = vst [vmem:[#allocation4] sm:$0xff] %v1883
        %1892 = vst [vmem:[#allocation4 + $0x10] sm:$0xff] %v1884
        %1893 = vst [vmem:[#allocation4 + $0x20] sm:$0xff] %v1885
        %1894 = vst [vmem:[#allocation4 + $0x30] sm:$0xff] %v1886
        %1895 = vst [vmem:[#allocation4 + $0x40] sm:$0xff] %v1887
        %1896 = vst [vmem:[#allocation4 + $0x50] sm:$0xff] %v1888
        %1897 = vst [vmem:[#allocation4 + $0x60] sm:$0xff] %v1889
        %1898 = vst [vmem:[#allocation4 + $0x70] sm:$0xff] %v1890
        %v1899 = vld [vmem:[#allocation2 + $0x8] sm:$0xff]
        %v1900 = vld [vmem:[#allocation2 + $0x18] sm:$0xff]
        %v1901 = vld [vmem:[#allocation2 + $0x28] sm:$0xff]
        %v1902 = vld [vmem:[#allocation2 + $0x38] sm:$0xff]
        %v1903 = vld [vmem:[#allocation2 + $0x48] sm:$0xff]
        %v1904 = vld [vmem:[#allocation2 + $0x58] sm:$0xff]
        %v1905 = vld [vmem:[#allocation2 + $0x68] sm:$0xff]
        %v1906 = vld [vmem:[#allocation2 + $0x78] sm:$0xff]
        %v1907 = vld [vmem:[#allocation2 + $0x88] sm:$0xff]
        %v1908 = vld [vmem:[#allocation2 + $0x98] sm:$0xff]
        %v1909 = vld [vmem:[#allocation2 + $0xa8] sm:$0xff]
        %v1910 = vld [vmem:[#allocation2 + $0xb8] sm:$0xff]
        %v1911 = vld [vmem:[#allocation2 + $0xc8] sm:$0xff]
        %v1912 = vld [vmem:[#allocation2 + $0xd8] sm:$0xff]
        %v1913 = vld [vmem:[#allocation2 + $0xe8] sm:$0xff]
        %v1914 = vld [vmem:[#allocation2 + $0xf8] sm:$0xff]
        %v1915 = vld [vmem:[#allocation3 + $0x8] sm:$0xff]
        %v1916 = vld [vmem:[#allocation3 + $0x18] sm:$0xff]
        %v1917 = vld [vmem:[#allocation3 + $0x28] sm:$0xff]
        %v1918 = vld [vmem:[#allocation3 + $0x38] sm:$0xff]
        %v1919 = vld [vmem:[#allocation3 + $0x48] sm:$0xff]
        %v1920 = vld [vmem:[#allocation3 + $0x58] sm:$0xff]
        %v1921 = vld [vmem:[#allocation3 + $0x68] sm:$0xff]
        %v1922 = vld [vmem:[#allocation3 + $0x78] sm:$0xff]
        %v1923 = vld [vmem:[#allocation3 + $0x88] sm:$0xff]
        %v1924 = vld [vmem:[#allocation3 + $0x98] sm:$0xff]
        %v1925 = vld [vmem:[#allocation3 + $0xa8] sm:$0xff]
        %v1926 = vld [vmem:[#allocation3 + $0xb8] sm:$0xff]
        %v1927 = vld [vmem:[#allocation3 + $0xc8] sm:$0xff]
        %v1928 = vld [vmem:[#allocation3 + $0xd8] sm:$0xff]
        %v1929 = vld [vmem:[#allocation3 + $0xe8] sm:$0xff]
        %v1930 = vld [vmem:[#allocation3 + $0xf8] sm:$0xff]
        %s1931 = scalar_lea.vmem %s447, 128 [#allocation13]
        %v1932 = vld [vmem:[%s1931] sm:$0xff]
        %v1933 = vld [vmem:[%s1931 + $0x8] sm:$0xff]
        %v1934 = vld [vmem:[%s1931 + $0x10] sm:$0xff]
        %v1935 = vld [vmem:[%s1931 + $0x18] sm:$0xff]
        %v1936 = vld [vmem:[%s1931 + $0x20] sm:$0xff]
        %v1937 = vld [vmem:[%s1931 + $0x28] sm:$0xff]
        %v1938 = vld [vmem:[%s1931 + $0x30] sm:$0xff]
        %v1939 = vld [vmem:[%s1931 + $0x38] sm:$0xff]
        %v1940 = vld [vmem:[%s1931 + $0x40] sm:$0xff]
        %v1941 = vld [vmem:[%s1931 + $0x48] sm:$0xff]
        %v1942 = vld [vmem:[%s1931 + $0x50] sm:$0xff]
        %v1943 = vld [vmem:[%s1931 + $0x58] sm:$0xff]
        %v1944 = vld [vmem:[%s1931 + $0x60] sm:$0xff]
        %v1945 = vld [vmem:[%s1931 + $0x68] sm:$0xff]
        %v1946 = vld [vmem:[%s1931 + $0x70] sm:$0xff]
        %v1947 = vld [vmem:[%s1931 + $0x78] sm:$0xff]
        %v1948 = vunpack.c.l.bf16 %v1932
        %v1949 = vunpack.c.h.bf16 %v1932
        %v1950 = vunpack.c.l.bf16 %v1933
        %v1951 = vunpack.c.h.bf16 %v1933
        %v1952 = vunpack.c.l.bf16 %v1934
        %v1953 = vunpack.c.h.bf16 %v1934
        %v1954 = vunpack.c.l.bf16 %v1935
        %v1955 = vunpack.c.h.bf16 %v1935
        %v1956 = vunpack.c.l.bf16 %v1936
        %v1957 = vunpack.c.h.bf16 %v1936
        %v1958 = vunpack.c.l.bf16 %v1937
        %v1959 = vunpack.c.h.bf16 %v1937
        %v1960 = vunpack.c.l.bf16 %v1938
        %v1961 = vunpack.c.h.bf16 %v1938
        %v1962 = vunpack.c.l.bf16 %v1939
        %v1963 = vunpack.c.h.bf16 %v1939
        %v1964 = vunpack.c.l.bf16 %v1940
        %v1965 = vunpack.c.h.bf16 %v1940
        %v1966 = vunpack.c.l.bf16 %v1941
        %v1967 = vunpack.c.h.bf16 %v1941
        %v1968 = vunpack.c.l.bf16 %v1942
        %v1969 = vunpack.c.h.bf16 %v1942
        %v1970 = vunpack.c.l.bf16 %v1943
        %v1971 = vunpack.c.h.bf16 %v1943
        %v1972 = vunpack.c.l.bf16 %v1944
        %v1973 = vunpack.c.h.bf16 %v1944
        %v1974 = vunpack.c.l.bf16 %v1945
        %v1975 = vunpack.c.h.bf16 %v1945
        %v1976 = vunpack.c.l.bf16 %v1946
        %v1977 = vunpack.c.h.bf16 %v1946
        %v1978 = vunpack.c.l.bf16 %v1947
        %v1979 = vunpack.c.h.bf16 %v1947
        %1980 = vmatprep.subr.bf16.mxu0 0
        %1981 = vmatpush1.bf16.xpose.msra.mxu0 %v1899
        %1982 = vmatprep.subr.bf16.mxu0 0
        %1983 = vmatpush1.bf16.xpose.msra.mxu0 %v1900
        %1984 = vmatprep.subr.bf16.mxu0 0
        %1985 = vmatpush1.bf16.xpose.msra.mxu0 %v1901
        %1986 = vmatprep.subr.bf16.mxu0 0
        %1987 = vmatpush1.bf16.xpose.msra.mxu0 %v1902
        %1988 = vmatprep.subr.bf16.mxu0 0
        %1989 = vmatpush1.bf16.xpose.msra.mxu0 %v1903
        %1990 = vmatprep.subr.bf16.mxu0 0
        %1991 = vmatpush1.bf16.xpose.msra.mxu0 %v1904
        %1992 = vmatprep.subr.bf16.mxu0 0
        %1993 = vmatpush1.bf16.xpose.msra.mxu0 %v1905
        %1994 = vmatprep.subr.bf16.mxu0 0
        %1995 = vmatpush1.bf16.xpose.msra.mxu0 %v1906
        %1996 = vmatprep.subr.bf16.mxu0 0
        %1997 = vmatpush1.bf16.xpose.msra.mxu0 %v1907
        %1998 = vmatprep.subr.bf16.mxu0 0
        %1999 = vmatpush1.bf16.xpose.msra.mxu0 %v1908
        %2000 = vmatprep.subr.bf16.mxu0 0
        %2001 = vmatpush1.bf16.xpose.msra.mxu0 %v1909
        %2002 = vmatprep.subr.bf16.mxu0 0
        %2003 = vmatpush1.bf16.xpose.msra.mxu0 %v1910
        %2004 = vmatprep.subr.bf16.mxu0 0
        %2005 = vmatpush1.bf16.xpose.msra.mxu0 %v1911
        %2006 = vmatprep.subr.bf16.mxu0 0
        %2007 = vmatpush1.bf16.xpose.msra.mxu0 %v1912
        %2008 = vmatprep.subr.bf16.mxu0 0
        %2009 = vmatpush1.bf16.xpose.msra.mxu0 %v1913
        %2010 = vmatprep.subr.bf16.mxu0 0
        %2011 = vmatpush1.bf16.xpose.msra.mxu0 %v1914
        %2012 = vmatprep.mubr.bf16.mxu0 0
        %2013 = vmatmul.mubr.bf16.gmra.mrb[0].mxu0 %v1338
        %v2014 = vpop.f32.mrb[0].mxu0
        %v2015 = vadd.f32 %v1948, %v2014
        %v2016 = vpop.f32.mrb[0].mxu0
        %v2017 = vadd.f32 %v1949, %v2016
        %v2018 = vpop.f32.mrb[0].mxu0
        %v2019 = vadd.f32 %v1950, %v2018
        %v2020 = vpop.f32.mrb[0].mxu0
        %v2021 = vadd.f32 %v1951, %v2020
        %2022 = vmatprep.mubr.bf16.mxu0 0
        %2023 = vmatmul.mubr.bf16.gmra.mrb[0].mxu0 %v1340
        %v2024 = vpop.f32.mrb[0].mxu0
        %v2025 = vadd.f32 %v1952, %v2024
        %v2026 = vpop.f32.mrb[0].mxu0
        %v2027 = vadd.f32 %v1953, %v2026
        %v2028 = vpop.f32.mrb[0].mxu0
        %v2029 = vadd.f32 %v1954, %v2028
        %v2030 = vpop.f32.mrb[0].mxu0
        %v2031 = vadd.f32 %v1955, %v2030
        %2032 = vmatprep.mubr.bf16.mxu0 0
        %2033 = vmatmul.mubr.bf16.gmra.mrb[0].mxu0 %v1342
        %v2034 = vpop.f32.mrb[0].mxu0
        %v2035 = vadd.f32 %v1956, %v2034
        %v2036 = vpop.f32.mrb[0].mxu0
        %v2037 = vadd.f32 %v1957, %v2036
        %v2038 = vpop.f32.mrb[0].mxu0
        %v2039 = vadd.f32 %v1958, %v2038
        %v2040 = vpop.f32.mrb[0].mxu0
        %v2041 = vadd.f32 %v1959, %v2040
        %2042 = vmatprep.mubr.bf16.mxu0 0
        %2043 = vmatmul.mubr.bf16.gmra.mrb[0].mxu0 %v1344
        %v2044 = vpop.f32.mrb[0].mxu0
        %v2045 = vadd.f32 %v1960, %v2044
        %v2046 = vpop.f32.mrb[0].mxu0
        %v2047 = vadd.f32 %v1961, %v2046
        %v2048 = vpop.f32.mrb[0].mxu0
        %v2049 = vadd.f32 %v1962, %v2048
        %v2050 = vpop.f32.mrb[0].mxu0
        %v2051 = vadd.f32 %v1963, %v2050
        %2052 = vmatprep.mubr.bf16.mxu0 0
        %2053 = vmatmul.mubr.bf16.gmra.mrb[0].mxu0 %v1346
        %v2054 = vpop.f32.mrb[0].mxu0
        %v2055 = vadd.f32 %v1964, %v2054
        %v2056 = vpop.f32.mrb[0].mxu0
        %v2057 = vadd.f32 %v1965, %v2056
        %v2058 = vpop.f32.mrb[0].mxu0
        %v2059 = vadd.f32 %v1966, %v2058
        %v2060 = vpop.f32.mrb[0].mxu0
        %v2061 = vadd.f32 %v1967, %v2060
        %2062 = vmatprep.mubr.bf16.mxu0 0
        %2063 = vmatmul.mubr.bf16.gmra.mrb[0].mxu0 %v1348
        %v2064 = vpop.f32.mrb[0].mxu0
        %v2065 = vadd.f32 %v1968, %v2064
        %v2066 = vpop.f32.mrb[0].mxu0
        %v2067 = vadd.f32 %v1969, %v2066
        %v2068 = vpop.f32.mrb[0].mxu0
        %v2069 = vadd.f32 %v1970, %v2068
        %v2070 = vpop.f32.mrb[0].mxu0
        %v2071 = vadd.f32 %v1971, %v2070
        %2072 = vmatprep.mubr.bf16.mxu0 0
        %2073 = vmatmul.mubr.bf16.gmra.mrb[0].mxu0 %v1350
        %v2074 = vpop.f32.mrb[0].mxu0
        %v2075 = vadd.f32 %v1972, %v2074
        %v2076 = vpop.f32.mrb[0].mxu0
        %v2077 = vadd.f32 %v1973, %v2076
        %v2078 = vpop.f32.mrb[0].mxu0
        %v2079 = vadd.f32 %v1974, %v2078
        %v2080 = vpop.f32.mrb[0].mxu0
        %v2081 = vadd.f32 %v1975, %v2080
        %2082 = vmatprep.mubr.bf16.mxu0 0
        %2083 = vmatmul.mubr.bf16.gmra.mrb[0].mxu0 %v1352
        %v2084 = vpop.f32.mrb[0].mxu0
        %v2085 = vadd.f32 %v1976, %v2084
        %v2086 = vpop.f32.mrb[0].mxu0
        %v2087 = vadd.f32 %v1977, %v2086
        %v2088 = vpop.f32.mrb[0].mxu0
        %v2089 = vadd.f32 %v1978, %v2088
        %v2090 = vpop.f32.mrb[0].mxu0
        %v2091 = vadd.f32 %v1979, %v2090
        %2092 = vdwg.mxu0
        %v2093 = vmax.f32 %v2015, %v2017
        %2094 = vmax.xlane.f32.xlu0 %v2093
        %v2095 = vpop.xlane.xlu0 %2094
        %v2096 = vmax.f32 %v2019, %v2021
        %2097 = vmax.xlane.f32.xlu0 %v2096
        %v2098 = vpop.xlane.xlu0 %2097
        %v2099 = vmax.f32 %v2025, %v2027
        %2100 = vmax.xlane.f32.xlu0 %v2099
        %v2101 = vpop.xlane.xlu0 %2100
        %v2102 = vmax.f32 %v2029, %v2031
        %2103 = vmax.xlane.f32.xlu0 %v2102
        %v2104 = vpop.xlane.xlu0 %2103
        %v2105 = vmax.f32 %v2035, %v2037
        %2106 = vmax.xlane.f32.xlu0 %v2105
        %v2107 = vpop.xlane.xlu0 %2106
        %v2108 = vmax.f32 %v2039, %v2041
        %2109 = vmax.xlane.f32.xlu0 %v2108
        %v2110 = vpop.xlane.xlu0 %2109
        %v2111 = vmax.f32 %v2045, %v2047
        %2112 = vmax.xlane.f32.xlu0 %v2111
        %v2113 = vpop.xlane.xlu0 %2112
        %v2114 = vmax.f32 %v2049, %v2051
        %2115 = vmax.xlane.f32.xlu0 %v2114
        %v2116 = vpop.xlane.xlu0 %2115
        %v2117 = vmax.f32 %v2055, %v2057
        %2118 = vmax.xlane.f32.xlu0 %v2117
        %v2119 = vpop.xlane.xlu0 %2118
        %v2120 = vmax.f32 %v2059, %v2061
        %2121 = vmax.xlane.f32.xlu0 %v2120
        %v2122 = vpop.xlane.xlu0 %2121
        %v2123 = vmax.f32 %v2065, %v2067
        %2124 = vmax.xlane.f32.xlu0 %v2123
        %v2125 = vpop.xlane.xlu0 %2124
        %v2126 = vmax.f32 %v2069, %v2071
        %2127 = vmax.xlane.f32.xlu0 %v2126
        %v2128 = vpop.xlane.xlu0 %2127
        %v2129 = vmax.f32 %v2075, %v2077
        %2130 = vmax.xlane.f32.xlu0 %v2129
        %v2131 = vpop.xlane.xlu0 %2130
        %v2132 = vmax.f32 %v2079, %v2081
        %2133 = vmax.xlane.f32.xlu0 %v2132
        %v2134 = vpop.xlane.xlu0 %2133
        %v2135 = vmax.f32 %v2085, %v2087
        %2136 = vmax.xlane.f32.xlu0 %v2135
        %v2137 = vpop.xlane.xlu0 %2136
        %v2138 = vmax.f32 %v2089, %v2091
        %2139 = vmax.xlane.f32.xlu0 %v2138
        %v2140 = vpop.xlane.xlu0 %2139
        %v2141 = vsub.f32 %v2015, %v2095
        %v2142 = vsub.f32 %v2017, %v2095
        %v2143 = vsub.f32 %v2019, %v2098
        %v2144 = vsub.f32 %v2021, %v2098
        %v2145 = vsub.f32 %v2025, %v2101
        %v2146 = vsub.f32 %v2027, %v2101
        %v2147 = vsub.f32 %v2029, %v2104
        %v2148 = vsub.f32 %v2031, %v2104
        %v2149 = vsub.f32 %v2035, %v2107
        %v2150 = vsub.f32 %v2037, %v2107
        %v2151 = vsub.f32 %v2039, %v2110
        %v2152 = vsub.f32 %v2041, %v2110
        %v2153 = vsub.f32 %v2045, %v2113
        %v2154 = vsub.f32 %v2047, %v2113
        %v2155 = vsub.f32 %v2049, %v2116
        %v2156 = vsub.f32 %v2051, %v2116
        %v2157 = vsub.f32 %v2055, %v2119
        %v2158 = vsub.f32 %v2057, %v2119
        %v2159 = vsub.f32 %v2059, %v2122
        %v2160 = vsub.f32 %v2061, %v2122
        %v2161 = vsub.f32 %v2065, %v2125
        %v2162 = vsub.f32 %v2067, %v2125
        %v2163 = vsub.f32 %v2069, %v2128
        %v2164 = vsub.f32 %v2071, %v2128
        %v2165 = vsub.f32 %v2075, %v2131
        %v2166 = vsub.f32 %v2077, %v2131
        %v2167 = vsub.f32 %v2079, %v2134
        %v2168 = vsub.f32 %v2081, %v2134
        %v2169 = vsub.f32 %v2085, %v2137
        %v2170 = vsub.f32 %v2087, %v2137
        %v2171 = vsub.f32 %v2089, %v2140
        %v2172 = vsub.f32 %v2091, %v2140
        %v2173 = vmul.f32 %v2141, 1.442695
        %v2174 = vpow.pop %v2173
        %v2175 = vmul.f32 %v2142, 1.442695
        %v2176 = vpow.pop %v2175
        %v2177 = vmul.f32 %v2143, 1.442695
        %v2178 = vpow.pop %v2177
        %v2179 = vmul.f32 %v2144, 1.442695
        %v2180 = vpow.pop %v2179
        %v2181 = vmul.f32 %v2145, 1.442695
        %v2182 = vpow.pop %v2181
        %v2183 = vmul.f32 %v2146, 1.442695
        %v2184 = vpow.pop %v2183
        %v2185 = vmul.f32 %v2147, 1.442695
        %v2186 = vpow.pop %v2185
        %v2187 = vmul.f32 %v2148, 1.442695
        %v2188 = vpow.pop %v2187
        %v2189 = vmul.f32 %v2149, 1.442695
        %v2190 = vpow.pop %v2189
        %v2191 = vmul.f32 %v2150, 1.442695
        %v2192 = vpow.pop %v2191
        %v2193 = vmul.f32 %v2151, 1.442695
        %v2194 = vpow.pop %v2193
        %v2195 = vmul.f32 %v2152, 1.442695
        %v2196 = vpow.pop %v2195
        %v2197 = vmul.f32 %v2153, 1.442695
        %v2198 = vpow.pop %v2197
        %v2199 = vmul.f32 %v2154, 1.442695
        %v2200 = vpow.pop %v2199
        %v2201 = vmul.f32 %v2155, 1.442695
        %v2202 = vpow.pop %v2201
        %v2203 = vmul.f32 %v2156, 1.442695
        %v2204 = vpow.pop %v2203
        %v2205 = vmul.f32 %v2157, 1.442695
        %v2206 = vpow.pop %v2205
        %v2207 = vmul.f32 %v2158, 1.442695
        %v2208 = vpow.pop %v2207
        %v2209 = vmul.f32 %v2159, 1.442695
        %v2210 = vpow.pop %v2209
        %v2211 = vmul.f32 %v2160, 1.442695
        %v2212 = vpow.pop %v2211
        %v2213 = vmul.f32 %v2161, 1.442695
        %v2214 = vpow.pop %v2213
        %v2215 = vmul.f32 %v2162, 1.442695
        %v2216 = vpow.pop %v2215
        %v2217 = vmul.f32 %v2163, 1.442695
        %v2218 = vpow.pop %v2217
        %v2219 = vmul.f32 %v2164, 1.442695
        %v2220 = vpow.pop %v2219
        %v2221 = vmul.f32 %v2165, 1.442695
        %v2222 = vpow.pop %v2221
        %v2223 = vmul.f32 %v2166, 1.442695
        %v2224 = vpow.pop %v2223
        %v2225 = vmul.f32 %v2167, 1.442695
        %v2226 = vpow.pop %v2225
        %v2227 = vmul.f32 %v2168, 1.442695
        %v2228 = vpow.pop %v2227
        %v2229 = vmul.f32 %v2169, 1.442695
        %v2230 = vpow.pop %v2229
        %v2231 = vmul.f32 %v2170, 1.442695
        %v2232 = vpow.pop %v2231
        %v2233 = vmul.f32 %v2171, 1.442695
        %v2234 = vpow.pop %v2233
        %v2235 = vmul.f32 %v2172, 1.442695
        %v2236 = vpow.pop %v2235
        %v2237 = vadd.f32 %v2174, %v2176
        %2238 = vadd.xlane.f32.xlu0 %v2237
        %v2239 = vpop.xlane.xlu0 %2238
        %v2240 = vadd.f32 %v2178, %v2180
        %2241 = vadd.xlane.f32.xlu0 %v2240
        %v2242 = vpop.xlane.xlu0 %2241
        %v2243 = vadd.f32 %v2182, %v2184
        %2244 = vadd.xlane.f32.xlu0 %v2243
        %v2245 = vpop.xlane.xlu0 %2244
        %v2246 = vadd.f32 %v2186, %v2188
        %2247 = vadd.xlane.f32.xlu0 %v2246
        %v2248 = vpop.xlane.xlu0 %2247
        %v2249 = vadd.f32 %v2190, %v2192
        %2250 = vadd.xlane.f32.xlu0 %v2249
        %v2251 = vpop.xlane.xlu0 %2250
        %v2252 = vadd.f32 %v2194, %v2196
        %2253 = vadd.xlane.f32.xlu0 %v2252
        %v2254 = vpop.xlane.xlu0 %2253
        %v2255 = vadd.f32 %v2198, %v2200
        %2256 = vadd.xlane.f32.xlu0 %v2255
        %v2257 = vpop.xlane.xlu0 %2256
        %v2258 = vadd.f32 %v2202, %v2204
        %2259 = vadd.xlane.f32.xlu0 %v2258
        %v2260 = vpop.xlane.xlu0 %2259
        %v2261 = vadd.f32 %v2206, %v2208
        %2262 = vadd.xlane.f32.xlu0 %v2261
        %v2263 = vpop.xlane.xlu0 %2262
        %v2264 = vadd.f32 %v2210, %v2212
        %2265 = vadd.xlane.f32.xlu0 %v2264
        %v2266 = vpop.xlane.xlu0 %2265
        %v2267 = vadd.f32 %v2214, %v2216
        %2268 = vadd.xlane.f32.xlu0 %v2267
        %v2269 = vpop.xlane.xlu0 %2268
        %v2270 = vadd.f32 %v2218, %v2220
        %2271 = vadd.xlane.f32.xlu0 %v2270
        %v2272 = vpop.xlane.xlu0 %2271
        %v2273 = vadd.f32 %v2222, %v2224
        %2274 = vadd.xlane.f32.xlu0 %v2273
        %v2275 = vpop.xlane.xlu0 %2274
        %v2276 = vadd.f32 %v2226, %v2228
        %2277 = vadd.xlane.f32.xlu0 %v2276
        %v2278 = vpop.xlane.xlu0 %2277
        %v2279 = vadd.f32 %v2230, %v2232
        %2280 = vadd.xlane.f32.xlu0 %v2279
        %v2281 = vpop.xlane.xlu0 %2280
        %v2282 = vadd.f32 %v2234, %v2236
        %2283 = vadd.xlane.f32.xlu0 %v2282
        %v2284 = vpop.xlane.xlu0 %2283
        %v2285 = vrcp.pop %v2239
        %v2286 = vrcp.pop %v2242
        %v2287 = vrcp.pop %v2245
        %v2288 = vrcp.pop %v2248
        %v2289 = vrcp.pop %v2251
        %v2290 = vrcp.pop %v2254
        %v2291 = vrcp.pop %v2257
        %v2292 = vrcp.pop %v2260
        %v2293 = vrcp.pop %v2263
        %v2294 = vrcp.pop %v2266
        %v2295 = vrcp.pop %v2269
        %v2296 = vrcp.pop %v2272
        %v2297 = vrcp.pop %v2275
        %v2298 = vrcp.pop %v2278
        %v2299 = vrcp.pop %v2281
        %v2300 = vrcp.pop %v2284
        %v2301 = vpack.c.bf16 %v2178, %v2174
        %v2302 = vpack.c.bf16 %v2180, %v2176
        %v2303 = vpack.c.bf16 %v2186, %v2182
        %v2304 = vpack.c.bf16 %v2188, %v2184
        %v2305 = vpack.c.bf16 %v2194, %v2190
        %v2306 = vpack.c.bf16 %v2196, %v2192
        %v2307 = vpack.c.bf16 %v2202, %v2198
        %v2308 = vpack.c.bf16 %v2204, %v2200
        %v2309 = vpack.c.bf16 %v2210, %v2206
        %v2310 = vpack.c.bf16 %v2212, %v2208
        %v2311 = vpack.c.bf16 %v2218, %v2214
        %v2312 = vpack.c.bf16 %v2220, %v2216
        %v2313 = vpack.c.bf16 %v2226, %v2222
        %v2314 = vpack.c.bf16 %v2228, %v2224
        %v2315 = vpack.c.bf16 %v2234, %v2230
        %v2316 = vpack.c.bf16 %v2236, %v2232
        %2317 = vmatprep.subr.bf16.mxu0 0
        %2318 = vmatpush1.bf16.msra.mxu0 %v1915
        %2319 = vmatprep.subr.bf16.mxu0 0
        %2320 = vmatpush1.bf16.msra.mxu0 %v1916
        %2321 = vmatprep.subr.bf16.mxu0 0
        %2322 = vmatpush1.bf16.msra.mxu0 %v1917
        %2323 = vmatprep.subr.bf16.mxu0 0
        %2324 = vmatpush1.bf16.msra.mxu0 %v1918
        %2325 = vmatprep.subr.bf16.mxu0 0
        %2326 = vmatpush1.bf16.msra.mxu0 %v1919
        %2327 = vmatprep.subr.bf16.mxu0 0
        %2328 = vmatpush1.bf16.msra.mxu0 %v1920
        %2329 = vmatprep.subr.bf16.mxu0 0
        %2330 = vmatpush1.bf16.msra.mxu0 %v1921
        %2331 = vmatprep.subr.bf16.mxu0 0
        %2332 = vmatpush1.bf16.msra.mxu0 %v1922
        %2333 = vmatprep.subr.bf16.mxu0 0
        %2334 = vmatpush1.bf16.msra.mxu0 %v1923
        %2335 = vmatprep.subr.bf16.mxu0 0
        %2336 = vmatpush1.bf16.msra.mxu0 %v1924
        %2337 = vmatprep.subr.bf16.mxu0 0
        %2338 = vmatpush1.bf16.msra.mxu0 %v1925
        %2339 = vmatprep.subr.bf16.mxu0 0
        %2340 = vmatpush1.bf16.msra.mxu0 %v1926
        %2341 = vmatprep.subr.bf16.mxu0 0
        %2342 = vmatpush1.bf16.msra.mxu0 %v1927
        %2343 = vmatprep.subr.bf16.mxu0 0
        %2344 = vmatpush1.bf16.msra.mxu0 %v1928
        %2345 = vmatprep.subr.bf16.mxu0 0
        %2346 = vmatpush1.bf16.msra.mxu0 %v1929
        %2347 = vmatprep.subr.bf16.mxu0 0
        %2348 = vmatpush1.bf16.msra.mxu0 %v1930
        %2349 = vmatprep.mubr.bf16.mxu0 %v2302
        %2350 = vmatmul.mubr.bf16.gmra.mrb[0].mxu0 %v2301
        %v2351 = vpop.f32.mrb[0].mxu0
        %v2352 = vadd.f32 0.0, %v2351
        %v2353 = vpop.f32.mrb[0].mxu0
        %v2354 = vpop.f32.mrb[0].mxu0
        %v2355 = vadd.f32 0.0, %v2354
        %v2356 = vpop.f32.mrb[0].mxu0
        %2357 = vmatprep.mubr.bf16.mxu0 %v2304
        %2358 = vmatmul.mubr.bf16.gmra.mrb[0].mxu0 %v2303
        %v2359 = vpop.f32.mrb[0].mxu0
        %v2360 = vadd.f32 0.0, %v2359
        %v2361 = vpop.f32.mrb[0].mxu0
        %v2362 = vpop.f32.mrb[0].mxu0
        %v2363 = vadd.f32 0.0, %v2362
        %v2364 = vpop.f32.mrb[0].mxu0
        %2365 = vmatprep.mubr.bf16.mxu0 %v2306
        %2366 = vmatmul.mubr.bf16.gmra.mrb[0].mxu0 %v2305
        %v2367 = vpop.f32.mrb[0].mxu0
        %v2368 = vadd.f32 0.0, %v2367
        %v2369 = vpop.f32.mrb[0].mxu0
        %v2370 = vpop.f32.mrb[0].mxu0
        %v2371 = vadd.f32 0.0, %v2370
        %v2372 = vpop.f32.mrb[0].mxu0
        %2373 = vmatprep.mubr.bf16.mxu0 %v2308
        %2374 = vmatmul.mubr.bf16.gmra.mrb[0].mxu0 %v2307
        %v2375 = vpop.f32.mrb[0].mxu0
        %v2376 = vadd.f32 0.0, %v2375
        %v2377 = vpop.f32.mrb[0].mxu0
        %v2378 = vpop.f32.mrb[0].mxu0
        %v2379 = vadd.f32 0.0, %v2378
        %v2380 = vpop.f32.mrb[0].mxu0
        %2381 = vmatprep.mubr.bf16.mxu0 %v2310
        %2382 = vmatmul.mubr.bf16.gmra.mrb[0].mxu0 %v2309
        %v2383 = vpop.f32.mrb[0].mxu0
        %v2384 = vadd.f32 0.0, %v2383
        %v2385 = vpop.f32.mrb[0].mxu0
        %v2386 = vpop.f32.mrb[0].mxu0
        %v2387 = vadd.f32 0.0, %v2386
        %v2388 = vpop.f32.mrb[0].mxu0
        %2389 = vmatprep.mubr.bf16.mxu0 %v2312
        %2390 = vmatmul.mubr.bf16.gmra.mrb[0].mxu0 %v2311
        %v2391 = vpop.f32.mrb[0].mxu0
        %v2392 = vadd.f32 0.0, %v2391
        %v2393 = vpop.f32.mrb[0].mxu0
        %v2394 = vpop.f32.mrb[0].mxu0
        %v2395 = vadd.f32 0.0, %v2394
        %v2396 = vpop.f32.mrb[0].mxu0
        %2397 = vmatprep.mubr.bf16.mxu0 %v2314
        %2398 = vmatmul.mubr.bf16.gmra.mrb[0].mxu0 %v2313
        %v2399 = vpop.f32.mrb[0].mxu0
        %v2400 = vadd.f32 0.0, %v2399
        %v2401 = vpop.f32.mrb[0].mxu0
        %v2402 = vpop.f32.mrb[0].mxu0
        %v2403 = vadd.f32 0.0, %v2402
        %v2404 = vpop.f32.mrb[0].mxu0
        %2405 = vmatprep.mubr.bf16.mxu0 %v2316
        %2406 = vmatmul.mubr.bf16.gmra.mrb[0].mxu0 %v2315
        %v2407 = vpop.f32.mrb[0].mxu0
        %v2408 = vadd.f32 0.0, %v2407
        %v2409 = vpop.f32.mrb[0].mxu0
        %v2410 = vpop.f32.mrb[0].mxu0
        %v2411 = vadd.f32 0.0, %v2410
        %v2412 = vpop.f32.mrb[0].mxu0
        %2413 = vdwg.mxu0
        %v2414 = vmul.f32 %v2352, %v2285
        %v2415 = vmul.f32 %v2355, %v2286
        %v2416 = vmul.f32 %v2360, %v2287
        %v2417 = vmul.f32 %v2363, %v2288
        %v2418 = vmul.f32 %v2368, %v2289
        %v2419 = vmul.f32 %v2371, %v2290
        %v2420 = vmul.f32 %v2376, %v2291
        %v2421 = vmul.f32 %v2379, %v2292
        %v2422 = vmul.f32 %v2384, %v2293
        %v2423 = vmul.f32 %v2387, %v2294
        %v2424 = vmul.f32 %v2392, %v2295
        %v2425 = vmul.f32 %v2395, %v2296
        %v2426 = vmul.f32 %v2400, %v2297
        %v2427 = vmul.f32 %v2403, %v2298
        %v2428 = vmul.f32 %v2408, %v2299
        %v2429 = vmul.f32 %v2411, %v2300
        %v2430 = vpack.c.bf16 %v2415, %v2414
        %v2431 = vpack.c.bf16 %v2417, %v2416
        %v2432 = vpack.c.bf16 %v2419, %v2418
        %v2433 = vpack.c.bf16 %v2421, %v2420
        %v2434 = vpack.c.bf16 %v2423, %v2422
        %v2435 = vpack.c.bf16 %v2425, %v2424
        %v2436 = vpack.c.bf16 %v2427, %v2426
        %v2437 = vpack.c.bf16 %v2429, %v2428
        %2438 = vst [vmem:[#allocation4 + $0x8] sm:$0xff] %v2430
        %2439 = vst [vmem:[#allocation4 + $0x18] sm:$0xff] %v2431
        %2440 = vst [vmem:[#allocation4 + $0x28] sm:$0xff] %v2432
        %2441 = vst [vmem:[#allocation4 + $0x38] sm:$0xff] %v2433
        %2442 = vst [vmem:[#allocation4 + $0x48] sm:$0xff] %v2434
        %2443 = vst [vmem:[#allocation4 + $0x58] sm:$0xff] %v2435
        %2444 = vst [vmem:[#allocation4 + $0x68] sm:$0xff] %v2436
        %2445 = vst [vmem:[#allocation4 + $0x78] sm:$0xff] %v2437
        %v2446 = vld [vmem:[#allocation14] sm:$0xff]
        %v2447 = vld [vmem:[#allocation14 + $0x8] sm:$0xff]
        %v2448 = vld [vmem:[#allocation4] sm:$0xff]
        %v2449 = vld [vmem:[#allocation4 + $0x8] sm:$0xff]
        %v2450 = vld [vmem:[#allocation4 + $0x10] sm:$0xff]
        %v2451 = vld [vmem:[#allocation4 + $0x18] sm:$0xff]
        %v2452 = vld [vmem:[#allocation4 + $0x20] sm:$0xff]
        %v2453 = vld [vmem:[#allocation4 + $0x28] sm:$0xff]
        %v2454 = vld [vmem:[#allocation4 + $0x30] sm:$0xff]
        %v2455 = vld [vmem:[#allocation4 + $0x38] sm:$0xff]
        %v2456 = vld [vmem:[#allocation4 + $0x40] sm:$0xff]
        %v2457 = vld [vmem:[#allocation4 + $0x48] sm:$0xff]
        %v2458 = vld [vmem:[#allocation4 + $0x50] sm:$0xff]
        %v2459 = vld [vmem:[#allocation4 + $0x58] sm:$0xff]
        %v2460 = vld [vmem:[#allocation4 + $0x60] sm:$0xff]
        %v2461 = vld [vmem:[#allocation4 + $0x68] sm:$0xff]
        %v2462 = vld [vmem:[#allocation4 + $0x70] sm:$0xff]
        %v2463 = vld [vmem:[#allocation4 + $0x78] sm:$0xff]
        %v2464 = vld [vmem:[%s8] sm:$0xff]
        %v2465 = vld [vmem:[%s8 + $0x8] sm:$0xff]
        %2467 = vset.pattern.permute.xlu0 0
        %2468 = vperm.xlu0 %2467, %v2464
        %v2469 = vpop.permute.xlu0 %2468
        %2472 = vset.pattern.permute.xlu0 0
        %2473 = vperm.xlu0 %2472, %v2465
        %v2474 = vpop.permute.xlu0 %2473
        %v2478 = vunpack.c.l.b16 %v2446
        %v2479 = vunpack.c.h.b16 %v2446
        %v2480 = vunpack.c.l.b16 %v2447
        %v2481 = vunpack.c.h.b16 %v2447
        %v2482 = vpack.c.b16 %v2480, %v2478
        %v2483 = vpack.c.b16 %v2481, %v2479
        %2486 = vmatprep.subr.bf16.mxu0 %v2449
        %2487 = vmatpush1.bf16.xpose.msra.mxu0 %v2448
        %2488 = vmatprep.subr.bf16.mxu0 %v2451
        %2489 = vmatpush1.bf16.xpose.msra.mxu0 %v2450
        %2490 = vmatprep.subr.bf16.mxu0 %v2453
        %2491 = vmatpush1.bf16.xpose.msra.mxu0 %v2452
        %2492 = vmatprep.subr.bf16.mxu0 %v2455
        %2493 = vmatpush1.bf16.xpose.msra.mxu0 %v2454
        %2494 = vmatprep.subr.bf16.mxu0 %v2457
        %2495 = vmatpush1.bf16.xpose.msra.mxu0 %v2456
        %2496 = vmatprep.subr.bf16.mxu0 %v2459
        %2497 = vmatpush1.bf16.xpose.msra.mxu0 %v2458
        %2498 = vmatprep.subr.bf16.mxu0 %v2461
        %2499 = vmatpush1.bf16.xpose.msra.mxu0 %v2460
        %2500 = vmatprep.subr.bf16.mxu0 %v2463
        %2501 = vmatpush1.bf16.xpose.msra.mxu0 %v2462
        %2502 = vmatprep.subr.bf16.mxu0 0
        %2503 = vmatpush1.bf16.xpose.msra.mxu0 0
        %2504 = vmatprep.subr.bf16.mxu0 0
        %2505 = vmatpush1.bf16.xpose.msra.mxu0 0
        %2506 = vmatprep.subr.bf16.mxu0 0
        %2507 = vmatpush1.bf16.xpose.msra.mxu0 0
        %2508 = vmatprep.subr.bf16.mxu0 0
        %2509 = vmatpush1.bf16.xpose.msra.mxu0 0
        %2510 = vmatprep.subr.bf16.mxu0 0
        %2511 = vmatpush1.bf16.xpose.msra.mxu0 0
        %2512 = vmatprep.subr.bf16.mxu0 0
        %2513 = vmatpush1.bf16.xpose.msra.mxu0 0
        %2514 = vmatprep.subr.bf16.mxu0 0
        %2515 = vmatpush1.bf16.xpose.msra.mxu0 0
        %2516 = vmatprep.subr.bf16.mxu0 0
        %2517 = vmatpush1.bf16.xpose.msra.mxu0 0
        %2518 = vmatprep.mubr.bf16.mxu0 %v2483
        %2519 = vmatmul.mubr.bf16.gmra.mrb[0].mxu0 %v2482
        %v2520 = vpop.f32.mrb[0].mxu0
        %v2521 = vadd.f32 %v2469, %v2520
        %v2522 = vpop.f32.mrb[0].mxu0
        %v2523 = vpop.f32.mrb[0].mxu0
        %v2524 = vadd.f32 %v2474, %v2523
        %v2525 = vpop.f32.mrb[0].mxu0
        %2526 = vdwg.mxu0
        %2527 = vst [vmem:[%s495] sm:$0xff] %v2521
        %2528 = vst [vmem:[%s495 + $0x8] sm:$0xff] %v2524
        %s2529 = sand.u32 %s256, 1
        %s2530 = scalar_lea.sflag [#allocation7], %s2529
        %s2531 = sand.u32 %s256, 1
        %s2532 = smul.addr %s2531, 16
        %s2533 = scalar_lea.vmem [#allocation15], %s2532
        // Predicated region
        $region85: #{tpu_custom_call.1} parent=55 // pred_check
          %p2534 = pneg %p266
        $region86: #{tpu_custom_call.1} parent=55 // pred_check_branch
          %2536 = sbr.rel (%p2534) target = $region88
        $region87: #{tpu_custom_call.1} parent=55 // pred_region
          %s2538 = ssub.s32 256, 256
          %2539 = vsyncadd %s2530, %s2538
          %s2540 = smul.addr %s32, 4
          %s2541 = sadd.s32 %s33, %s2540
          %s2542 = smul.addr %s2541, 128
          %s2543 = scalar_lea.hbm %s9, %s2542
          %s2544 = sshll.u32 %s2533, 4
          %s2545 = int_to_ptr.vmem [resolvable:$true] %s2544
          %2550 = dma.vmem_to_hbm [thread:$0]  %s2545, 256, %s2543, %s2530, 128, 256, 8
        $region88: #{tpu_custom_call.1} parent=55 // pred_fallthru
          _
      $region56: #{tpu_custom_call.1} parent=5 // pred_fallthru
        _
      %p2551 = scmp.le.s32.totalorder 2, %s23
      // Predicated region
      $region89: #{tpu_custom_call.1} parent=5 // pred_check
        %p2552 = pneg %p2551
      $region90: #{tpu_custom_call.1} parent=5 // pred_check_branch
        %2554 = sbr.rel (%p2552) target = $region92
      $region91: #{tpu_custom_call.1} parent=5 // pred_region
        %s2555 = ssub.s32 %s23, 2
        // Predicated region
        $region93: #{tpu_custom_call.1} parent=91 // pred_check
          %p2556 = pneg %p272
        $region94: #{tpu_custom_call.1} parent=91 // pred_check_branch
          %2558 = sbr.rel (%p2556) target = $region96
        $region95: #{tpu_custom_call.1} parent=91 // pred_region
          %s2559 = sand.u32 %s257, 1
          %s2560 = scalar_lea.sflag [#allocation7], %s2559
          %s2561 = sand.u32 %s257, 1
          %s2562 = smul.addr %s2561, 16
          %s2563 = scalar_lea.vmem [#allocation15], %s2562
          %2564 = dma.done %s2560, 256
        $region96: #{tpu_custom_call.1} parent=91 // pred_fallthru
          _
      $region92: #{tpu_custom_call.1} parent=5 // pred_fallthru
        _
    $region6: #{tpu_custom_call.1} parent=1 // loop_footer
      %s27 = sadd.s32 1, %s23
    $region7: #{tpu_custom_call.1} parent=1 // loop_footer_branch
      %22 = sbr.rel target = $region3
    $region8: #{tpu_custom_call.1} parent=1 // loop_exit
      _
    %2565 = vsyncpa [#allocation6], 1
    %s2566 = scalar_lea.sflag [#allocation6], 1
    %2567 = vsyncpa %s2566, 1
    %2568 = vsyncpa [#allocation9], 1
    %2569 = vsyncpa [#allocation12], 1
    %2570 = vsyncpa [#allocation7], 1
    %s2571 = scalar_lea.sflag [#allocation7], 1
    %2572 = vsyncpa %s2571, 1

</llo_original>
